<compile_context>
chip_gen: v5e
topology: v5e:2x2
jax: 0.10.0
libtpu: 0.0.40
codegen_flags: <defaults>
</compile_context>

<pallas_src>
import jax
import jax.numpy as jnp
import numpy as np
from jax import lax
from jax.experimental import pallas as pl
from jax.experimental.pallas import tpu as pltpu


def _round_up(x, m):
    return ((x + m - 1) // m) * m


def _leaky(x):
    return jnp.where(x > 0, x, 0.1 * x)


# ---------------------------------------------------------------------------
# Fused MRF kernel
# ---------------------------------------------------------------------------
def _make_mrf_kernel(conv_meta, L, TL, H, PM, C, R, scale):
    """conv_meta: list (per ResBlock) of list of (K, dilation, pad)."""
    n_convs = sum(len(rb) for rb in conv_meta)
    S = TL + 2 * H                       # activation rows held per tile

    def kernel(*refs):
        x_hbm = refs[0]                                  # (N*R, C) in HBM
        wb = refs[1:1 + 2 * n_convs]                     # (W_stack, bias) pairs
        o_ref = refs[1 + 2 * n_convs]                    # (1, TL, C)
        y_ref, z_ref, slab_ref, sem = refs[2 + 2 * n_convs:]

        n = pl.program_id(0)
        lt = pl.program_id(1)

        # ---- DMA the overlapping input window for this tile into VMEM ----
        start = pl.multiple_of(n * R + lt * TL, 8)
        cp = pltpu.make_async_copy(x_hbm.at[pl.ds(start, S), :],
                                   y_ref, sem.at[0])
        cp.start()
        cp.wait()

        # Conv scratch slab: the center S rows hold the activation, the outer
        # PM rows stay zero and provide every conv's zero padding.
        slab_ref[...] = jnp.zeros_like(slab_ref)

        # Rows of this window that map to real signal positions [0, L).
        row = lax.broadcasted_iota(jnp.int32, (S, C), 0)
        pos = row + (lt * TL - H)
        valid = jnp.logical_and(pos >= 0, pos < L)

        ci = 0
        for bi, rb_meta in enumerate(conv_meta):
            # z = input of this ResBlock
            z_ref[...] = y_ref[...]
            for (K, d, p) in rb_meta:
                w_ref, b_ref = wb[2 * ci], wb[2 * ci + 1]
                ci += 1
                # LeakyReLU in f32; out-of-signal rows forced to the zeros that
                # PyTorch's Conv1d padding would supply.
                h = jnp.where(valid, _leaky(z_ref[...]), 0.0)
                slab_ref[PM:PM + S, :] = h
                s = slab_ref[...]
                # Stack the K dilated taps along the contraction axis and do
                # ONE (S, K*C) x (K*C, C) MXU matmul (bf16 in, f32 accum).
                base = PM - p
                taps = [s[base + k * d: base + k * d + S, :] for k in range(K)]
                h_stack = jnp.concatenate(taps, axis=-1).astype(jnp.bfloat16)
                conv = jnp.dot(h_stack, w_ref[...],
                               preferred_element_type=jnp.float32)
                z_ref[...] = z_ref[...] + conv + b_ref[...]
            if bi == 0:
                y_ref[...] = z_ref[...]                   # x = blocks[0](x)
            else:
                y_ref[...] = y_ref[...] + z_ref[...]      # x = x + blocks[i](x)

        # Only the central TL rows are exact for every tile; store those.
        o_ref[0] = (y_ref[H:H + TL, :] * scale).astype(o_ref.dtype)

    return kernel


def mrf_forward(x_ncl, kernel_params, *, tile_l=512):
    """x_ncl: (N, C, L) to match PyTorch Conv1d layout.
    kernel_params: list (per ResBlock) of list of
                   (W_stack (K*C, C) bf16, bias (C,) f32, K, dilation)."""
    N, C, L = x_ncl.shape
    x = jnp.transpose(x_ncl, (0, 2, 1)).astype(jnp.float32)   # (N, L, C)

    conv_meta, flat_wb, pads = [], [], []
    for rb in kernel_params:
        rb_meta = []
        for (W, b, K, d) in rb:
            p = (K - 1) * d // 2
            rb_meta.append((K, d, p))
            pads.append(p)
            flat_wb += [W.astype(jnp.bfloat16),
                        b.reshape(1, C).astype(jnp.float32)]
        conv_meta.append(rb_meta)
    H = sum(pads)                    # receptive-field halo of the whole chain
    PM = _round_up(max(pads), 8)     # per-conv zero-padding band in the slab

    # L tiling (keeps VMEM bounded at production lengths and gives the
    # pipeline depth); at small L this collapses to a single tile.
    TL = min(_round_up(tile_l, 8), _round_up(L, 8))
    n_lt = -(-L // TL)
    L_pad = n_lt * TL
    S = TL + 2 * H
    R = _round_up(L_pad + 2 * H, 8)  # padded row-stride per batch element

    # One boundary-halo pad for the WHOLE fused chain (PyTorch pads per conv).
    xp = jnp.pad(x, ((0, 0), (H, R - L - H), (0, 0)))
    xp_flat = xp.reshape(N * R, C)

    n_blocks = len(kernel_params)
    kernel = _make_mrf_kernel(conv_meta, L, TL, H, PM, C, R, 1.0 / n_blocks)

    in_specs = [pl.BlockSpec(memory_space=pl.ANY)]        # x stays in HBM
    for rb in kernel_params:
        for (W, b, K, d) in rb:
            in_specs.append(pl.BlockSpec((K * C, C), lambda n, lt: (0, 0)))
            in_specs.append(pl.BlockSpec((1, C), lambda n, lt: (0, 0)))

    out = pl.pallas_call(
        kernel,
        out_shape=jax.ShapeDtypeStruct((N, L_pad, C), x_ncl.dtype),
        grid=(N, n_lt),
        in_specs=in_specs,
        out_specs=pl.BlockSpec((1, TL, C), lambda n, lt: (n, lt, 0)),
        scratch_shapes=[
            pltpu.VMEM((S, C), jnp.float32),              # y: running MRF state
            pltpu.VMEM((S, C), jnp.float32),              # z: ResBlock state
            pltpu.VMEM((S + 2 * PM, C), jnp.float32),     # zero-padded conv slab
            pltpu.SemaphoreType.DMA((1,)),
        ],
        compiler_params=pltpu.CompilerParams(
            dimension_semantics=("parallel", "parallel")),
    )(xp_flat, *flat_wb)

    out = out[:, :L, :]
    return jnp.transpose(out, (0, 2, 1))                  # back to (N, C, L)


# ---------------------------------------------------------------------------
# Pure-JAX reference (lax.conv, f32) for correctness checking
# ---------------------------------------------------------------------------
def _ref_conv_step(x_ncl, w_oik, b, dilation):
    pad = (w_oik.shape[-1] - 1) * dilation // 2
    h = jnp.where(x_ncl > 0, x_ncl, 0.1 * x_ncl)
    y = lax.conv_general_dilated(
        h, w_oik, window_strides=(1,), padding=[(pad, pad)],
        rhs_dilation=(dilation,),
        dimension_numbers=("NCH", "OIH", "NCH"))
    return x_ncl + y + b[None, :, None]


def mrf_reference(x_ncl, torch_params):
    def resblock(x, bp):
        for (w, b, d) in bp:
            x = _ref_conv_step(x, w, b, d)
        return x
    y = resblock(x_ncl, torch_params[0])
    for bp in torch_params[1:]:
        y = y + resblock(y, bp)
    return y / len(torch_params)


# ---------------------------------------------------------------------------
if __name__ == "__main__":
    N, C, L = 2, 32, 16
    kr = [3, 5]
    dr = [[1, 3], [2, 6]]

    key = jax.random.PRNGKey(0)
    key, xk = jax.random.split(key)
    x = jax.random.normal(xk, (N, C, L), dtype=jnp.float32)

    # weight_norm at init reproduces the underlying conv weight (g = ||v||),
    # so generating plain conv weights is equivalent for the forward pass.
    # Weights are rounded to bf16 (the kernel's matmul operand dtype) so the
    # f32 reference uses numerically identical parameters.
    torch_params = []    # (w in torch OIK layout, b, dilation)   -> reference
    kernel_params = []   # (W_stack (K*C,C) bf16, b, K, dilation) -> kernel
    for i in range(len(kr)):
        K = kr[i]
        bp_t, bp_k = [], []
        for j in range(2):
            key, wk, bk = jax.random.split(key, 3)
            w_oik = 0.1 * jax.random.normal(wk, (C, C, K), dtype=jnp.float32)
            w_oik = w_oik.astype(jnp.bfloat16).astype(jnp.float32)
            b = 0.1 * jax.random.normal(bk, (C,), dtype=jnp.float32)
            d = dr[i][j]
            bp_t.append((w_oik, b, d))
            # (O, I, K) -> (K, I, O) -> (K*I, O): tap-major contraction axis.
            w_stack = jnp.transpose(w_oik, (2, 1, 0)).reshape(K * C, C)
            bp_k.append((w_stack.astype(jnp.bfloat16), b, K, d))
        torch_params.append(bp_t)
        kernel_params.append(bp_k)

    out = jax.block_until_ready(mrf_forward(x, kernel_params))
    ref = jax.block_until_ready(mrf_reference(x, torch_params))
    np.testing.assert_allclose(np.asarray(out), np.asarray(ref),
                               rtol=1e-2, atol=1e-2)

    print("KERNEL_OK")
</pallas_src>

<mosaic_0001>
module attributes {stable_mosaic.version = 11 : i64} {
  func.func @kernel(%arg0: i32, %arg1: i32, %arg2: memref<112x32xf32, #tpu.memory_space<any>>, %arg3: memref<96x32xbf16, #tpu.memory_space<vmem>>, %arg4: memref<1x32xf32, #tpu.memory_space<vmem>>, %arg5: memref<96x32xbf16, #tpu.memory_space<vmem>>, %arg6: memref<1x32xf32, #tpu.memory_space<vmem>>, %arg7: memref<160x32xbf16, #tpu.memory_space<vmem>>, %arg8: memref<1x32xf32, #tpu.memory_space<vmem>>, %arg9: memref<160x32xbf16, #tpu.memory_space<vmem>>, %arg10: memref<1x32xf32, #tpu.memory_space<vmem>>, %arg11: memref<1x16x32xf32, #tpu.memory_space<vmem>>, %arg12: memref<56x32xf32, #tpu.memory_space<vmem>>, %arg13: memref<56x32xf32, #tpu.memory_space<vmem>>, %arg14: memref<88x32xf32, #tpu.memory_space<vmem>>, %arg15: memref<1x!tpu.dma_semaphore, #tpu.memory_space<semaphore_mem>>) attributes {dimension_semantics = [#tpu.dimension_semantics<parallel>, #tpu.dimension_semantics<parallel>], iteration_bounds = array<i64: 2, 1>, scalar_prefetch = 0 : i64, scratch_operands = 4 : i64, tpu.core_type = #tpu.core_type<tc>, window_params = [{}, {pipeline_mode = #tpu.pipeline_mode<synchronous>, transform_indices = @transform_1, window_bounds = array<i64: 96, 32>}, {pipeline_mode = #tpu.pipeline_mode<synchronous>, transform_indices = @transform_2, window_bounds = array<i64: 1, 32>}, {pipeline_mode = #tpu.pipeline_mode<synchronous>, transform_indices = @transform_3, window_bounds = array<i64: 96, 32>}, {pipeline_mode = #tpu.pipeline_mode<synchronous>, transform_indices = @transform_4, window_bounds = array<i64: 1, 32>}, {pipeline_mode = #tpu.pipeline_mode<synchronous>, transform_indices = @transform_5, window_bounds = array<i64: 160, 32>}, {pipeline_mode = #tpu.pipeline_mode<synchronous>, transform_indices = @transform_6, window_bounds = array<i64: 1, 32>}, {pipeline_mode = #tpu.pipeline_mode<synchronous>, transform_indices = @transform_7, window_bounds = array<i64: 160, 32>}, {pipeline_mode = #tpu.pipeline_mode<synchronous>, transform_indices = @transform_8, window_bounds = array<i64: 1, 32>}, {transform_indices = @transform_9, window_bounds = array<i64: 1, 16, 32>}]} {
    %c56_i32 = arith.constant 56 : i32
    %0 = arith.muli %arg0, %c56_i32 : i32
    %c16_i32 = arith.constant 16 : i32
    %1 = arith.muli %arg1, %c16_i32 : i32
    %2 = arith.addi %0, %1 : i32
    %3 = tpu.assume_multiple %2, 8 : i32
    %c0_i32 = arith.constant 0 : i32
    %c0_i32_0 = arith.constant 0 : i32
    %4 = tpu.memref_slice %arg2[%3, %c0_i32_0] : memref<112x32xf32, #tpu.memory_space<any>> -> memref<56x32xf32, #tpu.memory_space<any>>
    %5 = tpu.memref_slice %arg15[%c0_i32] : memref<1x!tpu.dma_semaphore, #tpu.memory_space<semaphore_mem>> -> memref<1x!tpu.dma_semaphore, #tpu.memory_space<semaphore_mem>>
    %6 = tpu.memref_squeeze %5 : memref<1x!tpu.dma_semaphore, #tpu.memory_space<semaphore_mem>> -> memref<!tpu.dma_semaphore, #tpu.memory_space<semaphore_mem>>
    tpu.enqueue_dma source(%4 : memref<56x32xf32, #tpu.memory_space<any>>) target(%arg12 : memref<56x32xf32, #tpu.memory_space<vmem>>) target_semaphore(%6 : memref<!tpu.dma_semaphore, #tpu.memory_space<semaphore_mem>>)
    %c0_i32_1 = arith.constant 0 : i32
    %c0_i32_2 = arith.constant 0 : i32
    %7 = tpu.memref_slice %arg2[%3, %c0_i32_2] : memref<112x32xf32, #tpu.memory_space<any>> -> memref<56x32xf32, #tpu.memory_space<any>>
    %8 = tpu.memref_slice %arg15[%c0_i32_1] : memref<1x!tpu.dma_semaphore, #tpu.memory_space<semaphore_mem>> -> memref<1x!tpu.dma_semaphore, #tpu.memory_space<semaphore_mem>>
    %9 = tpu.memref_squeeze %8 : memref<1x!tpu.dma_semaphore, #tpu.memory_space<semaphore_mem>> -> memref<!tpu.dma_semaphore, #tpu.memory_space<semaphore_mem>>
    tpu.wait_dma2 semaphore(%9 : memref<!tpu.dma_semaphore, #tpu.memory_space<semaphore_mem>>) src(%7 : memref<56x32xf32, #tpu.memory_space<any>>) dst(%arg12 : memref<56x32xf32, #tpu.memory_space<vmem>>)
    %cst = arith.constant 0.000000e+00 : f32
    %10 = vector.broadcast %cst : f32 to vector<88x32xf32>
    %c0 = arith.constant 0 : index
    %c0_3 = arith.constant 0 : index
    %11 = vector.load %arg14[%c0, %c0_3] : memref<88x32xf32, #tpu.memory_space<vmem>>, vector<88x32xf32>
    tpu.vector_store %arg14[%c0, %c0_3], %10 {strides = array<i32>} : memref<88x32xf32, #tpu.memory_space<vmem>>, vector<88x32xf32>,
    %12 = tpu.iota {dimensions = array<i32: 0>} : vector<56x32xi32>
    %c16_i32_4 = arith.constant 16 : i32
    %13 = arith.muli %arg1, %c16_i32_4 : i32
    %c20_i32 = arith.constant 20 : i32
    %14 = arith.subi %13, %c20_i32 : i32
    %15 = vector.broadcast %14 : i32 to vector<56x32xi32>
    %16 = arith.addi %12, %15 : vector<56x32xi32>
    %c0_i32_5 = arith.constant 0 : i32
    %17 = vector.broadcast %c0_i32_5 : i32 to vector<56x32xi32>
    %18 = arith.cmpi sge, %16, %17 : vector<56x32xi32>
    %c16_i32_6 = arith.constant 16 : i32
    %19 = vector.broadcast %c16_i32_6 : i32 to vector<56x32xi32>
    %20 = arith.cmpi slt, %16, %19 : vector<56x32xi32>
    %21 = arith.andi %18, %20 : vector<56x32xi1>
    %c0_7 = arith.constant 0 : index
    %c0_8 = arith.constant 0 : index
    %22 = vector.load %arg12[%c0_7, %c0_8] : memref<56x32xf32, #tpu.memory_space<vmem>>, vector<56x32xf32>
    %c0_9 = arith.constant 0 : index
    %c0_10 = arith.constant 0 : index
    %23 = vector.load %arg13[%c0_9, %c0_10] : memref<56x32xf32, #tpu.memory_space<vmem>>, vector<56x32xf32>
    tpu.vector_store %arg13[%c0_9, %c0_10], %22 {strides = array<i32>} : memref<56x32xf32, #tpu.memory_space<vmem>>, vector<56x32xf32>,
    %c0_11 = arith.constant 0 : index
    %c0_12 = arith.constant 0 : index
    %24 = vector.load %arg13[%c0_11, %c0_12] : memref<56x32xf32, #tpu.memory_space<vmem>>, vector<56x32xf32>
    %cst_13 = arith.constant 0.000000e+00 : f32
    %25 = vector.broadcast %cst_13 : f32 to vector<56x32xf32>
    %26 = arith.cmpf ogt, %24, %25 : vector<56x32xf32>
    %cst_14 = arith.constant 1.000000e-01 : f32
    %27 = vector.broadcast %cst_14 : f32 to vector<56x32xf32>
    %28 = arith.mulf %27, %24 : vector<56x32xf32>
    %29 = arith.select %26, %24, %28 : vector<56x32xi1>, vector<56x32xf32>
    %cst_15 = arith.constant 0.000000e+00 : f32
    %30 = vector.broadcast %cst_15 : f32 to vector<56x32xf32>
    %31 = arith.select %21, %29, %30 : vector<56x32xi1>, vector<56x32xf32>
    %c16 = arith.constant 16 : index
    %c0_16 = arith.constant 0 : index
    %32 = vector.load %arg14[%c16, %c0_16] : memref<88x32xf32, #tpu.memory_space<vmem>>, vector<56x32xf32>
    tpu.vector_store %arg14[%c16, %c0_16], %31 {strides = array<i32>} : memref<88x32xf32, #tpu.memory_space<vmem>>, vector<56x32xf32>,
    %c0_17 = arith.constant 0 : index
    %c0_18 = arith.constant 0 : index
    %33 = vector.load %arg14[%c0_17, %c0_18] : memref<88x32xf32, #tpu.memory_space<vmem>>, vector<88x32xf32>
    %34 = vector.extract_strided_slice %33 {offsets = [15, 0], sizes = [56, 32], strides = [1, 1]} : vector<88x32xf32> to vector<56x32xf32>
    %35 = vector.extract_strided_slice %33 {offsets = [16, 0], sizes = [56, 32], strides = [1, 1]} : vector<88x32xf32> to vector<56x32xf32>
    %36 = vector.extract_strided_slice %33 {offsets = [17, 0], sizes = [56, 32], strides = [1, 1]} : vector<88x32xf32> to vector<56x32xf32>
    %37 = tpu.concatenate %34, %35, %36 in 1 : vector<56x32xf32>, vector<56x32xf32>, vector<56x32xf32> -> vector<56x96xf32>
    %38 = arith.truncf %37 : vector<56x96xf32> to vector<56x96xbf16>
    %c0_19 = arith.constant 0 : index
    %c0_20 = arith.constant 0 : index
    %39 = vector.load %arg3[%c0_19, %c0_20] : memref<96x32xbf16, #tpu.memory_space<vmem>>, vector<96x32xbf16>
    %cst_21 = arith.constant dense<0.000000e+00> : vector<56x32xf32>
    %40 = tpu.matmul %38, %39, %cst_21 {dimension_numbers = #tpu.dot_dimension_numbers<[1], [0], [0], [1], [0, 0, 1, 1], [], []>} : vector<56x96xbf16>, vector<96x32xbf16>, vector<56x32xf32> -> vector<56x32xf32>
    %c0_22 = arith.constant 0 : index
    %c0_23 = arith.constant 0 : index
    %41 = vector.load %arg13[%c0_22, %c0_23] : memref<56x32xf32, #tpu.memory_space<vmem>>, vector<56x32xf32>
    %42 = arith.addf %41, %40 : vector<56x32xf32>
    %c0_24 = arith.constant 0 : index
    %c0_25 = arith.constant 0 : index
    %43 = vector.load %arg4[%c0_24, %c0_25] : memref<1x32xf32, #tpu.memory_space<vmem>>, vector<1x32xf32>
    %44 = vector.broadcast %43 : vector<1x32xf32> to vector<56x32xf32>
    %45 = arith.addf %42, %44 : vector<56x32xf32>
    %c0_26 = arith.constant 0 : index
    %c0_27 = arith.constant 0 : index
    %46 = vector.load %arg13[%c0_26, %c0_27] : memref<56x32xf32, #tpu.memory_space<vmem>>, vector<56x32xf32>
    tpu.vector_store %arg13[%c0_26, %c0_27], %45 {strides = array<i32>} : memref<56x32xf32, #tpu.memory_space<vmem>>, vector<56x32xf32>,
    %c0_28 = arith.constant 0 : index
    %c0_29 = arith.constant 0 : index
    %47 = vector.load %arg13[%c0_28, %c0_29] : memref<56x32xf32, #tpu.memory_space<vmem>>, vector<56x32xf32>
    %cst_30 = arith.constant 0.000000e+00 : f32
    %48 = vector.broadcast %cst_30 : f32 to vector<56x32xf32>
    %49 = arith.cmpf ogt, %47, %48 : vector<56x32xf32>
    %cst_31 = arith.constant 1.000000e-01 : f32
    %50 = vector.broadcast %cst_31 : f32 to vector<56x32xf32>
    %51 = arith.mulf %50, %47 : vector<56x32xf32>
    %52 = arith.select %49, %47, %51 : vector<56x32xi1>, vector<56x32xf32>
    %cst_32 = arith.constant 0.000000e+00 : f32
    %53 = vector.broadcast %cst_32 : f32 to vector<56x32xf32>
    %54 = arith.select %21, %52, %53 : vector<56x32xi1>, vector<56x32xf32>
    %c16_33 = arith.constant 16 : index
    %c0_34 = arith.constant 0 : index
    %55 = vector.load %arg14[%c16_33, %c0_34] : memref<88x32xf32, #tpu.memory_space<vmem>>, vector<56x32xf32>
    tpu.vector_store %arg14[%c16_33, %c0_34], %54 {strides = array<i32>} : memref<88x32xf32, #tpu.memory_space<vmem>>, vector<56x32xf32>,
    %c0_35 = arith.constant 0 : index
    %c0_36 = arith.constant 0 : index
    %56 = vector.load %arg14[%c0_35, %c0_36] : memref<88x32xf32, #tpu.memory_space<vmem>>, vector<88x32xf32>
    %57 = vector.extract_strided_slice %56 {offsets = [13, 0], sizes = [56, 32], strides = [1, 1]} : vector<88x32xf32> to vector<56x32xf32>
    %58 = vector.extract_strided_slice %56 {offsets = [16, 0], sizes = [56, 32], strides = [1, 1]} : vector<88x32xf32> to vector<56x32xf32>
    %59 = vector.extract_strided_slice %56 {offsets = [19, 0], sizes = [56, 32], strides = [1, 1]} : vector<88x32xf32> to vector<56x32xf32>
    %60 = tpu.concatenate %57, %58, %59 in 1 : vector<56x32xf32>, vector<56x32xf32>, vector<56x32xf32> -> vector<56x96xf32>
    %61 = arith.truncf %60 : vector<56x96xf32> to vector<56x96xbf16>
    %c0_37 = arith.constant 0 : index
    %c0_38 = arith.constant 0 : index
    %62 = vector.load %arg5[%c0_37, %c0_38] : memref<96x32xbf16, #tpu.memory_space<vmem>>, vector<96x32xbf16>
    %cst_39 = arith.constant dense<0.000000e+00> : vector<56x32xf32>
    %63 = tpu.matmul %61, %62, %cst_39 {dimension_numbers = #tpu.dot_dimension_numbers<[1], [0], [0], [1], [0, 0, 1, 1], [], []>} : vector<56x96xbf16>, vector<96x32xbf16>, vector<56x32xf32> -> vector<56x32xf32>
    %c0_40 = arith.constant 0 : index
    %c0_41 = arith.constant 0 : index
    %64 = vector.load %arg13[%c0_40, %c0_41] : memref<56x32xf32, #tpu.memory_space<vmem>>, vector<56x32xf32>
    %65 = arith.addf %64, %63 : vector<56x32xf32>
    %c0_42 = arith.constant 0 : index
    %c0_43 = arith.constant 0 : index
    %66 = vector.load %arg6[%c0_42, %c0_43] : memref<1x32xf32, #tpu.memory_space<vmem>>, vector<1x32xf32>
    %67 = vector.broadcast %66 : vector<1x32xf32> to vector<56x32xf32>
    %68 = arith.addf %65, %67 : vector<56x32xf32>
    %c0_44 = arith.constant 0 : index
    %c0_45 = arith.constant 0 : index
    %69 = vector.load %arg13[%c0_44, %c0_45] : memref<56x32xf32, #tpu.memory_space<vmem>>, vector<56x32xf32>
    tpu.vector_store %arg13[%c0_44, %c0_45], %68 {strides = array<i32>} : memref<56x32xf32, #tpu.memory_space<vmem>>, vector<56x32xf32>,
    %c0_46 = arith.constant 0 : index
    %c0_47 = arith.constant 0 : index
    %70 = vector.load %arg13[%c0_46, %c0_47] : memref<56x32xf32, #tpu.memory_space<vmem>>, vector<56x32xf32>
    %c0_48 = arith.constant 0 : index
    %c0_49 = arith.constant 0 : index
    %71 = vector.load %arg12[%c0_48, %c0_49] : memref<56x32xf32, #tpu.memory_space<vmem>>, vector<56x32xf32>
    tpu.vector_store %arg12[%c0_48, %c0_49], %70 {strides = array<i32>} : memref<56x32xf32, #tpu.memory_space<vmem>>, vector<56x32xf32>,
    %c0_50 = arith.constant 0 : index
    %c0_51 = arith.constant 0 : index
    %72 = vector.load %arg12[%c0_50, %c0_51] : memref<56x32xf32, #tpu.memory_space<vmem>>, vector<56x32xf32>
    %c0_52 = arith.constant 0 : index
    %c0_53 = arith.constant 0 : index
    %73 = vector.load %arg13[%c0_52, %c0_53] : memref<56x32xf32, #tpu.memory_space<vmem>>, vector<56x32xf32>
    tpu.vector_store %arg13[%c0_52, %c0_53], %72 {strides = array<i32>} : memref<56x32xf32, #tpu.memory_space<vmem>>, vector<56x32xf32>,
    %c0_54 = arith.constant 0 : index
    %c0_55 = arith.constant 0 : index
    %74 = vector.load %arg13[%c0_54, %c0_55] : memref<56x32xf32, #tpu.memory_space<vmem>>, vector<56x32xf32>
    %cst_56 = arith.constant 0.000000e+00 : f32
    %75 = vector.broadcast %cst_56 : f32 to vector<56x32xf32>
    %76 = arith.cmpf ogt, %74, %75 : vector<56x32xf32>
    %cst_57 = arith.constant 1.000000e-01 : f32
    %77 = vector.broadcast %cst_57 : f32 to vector<56x32xf32>
    %78 = arith.mulf %77, %74 : vector<56x32xf32>
    %79 = arith.select %76, %74, %78 : vector<56x32xi1>, vector<56x32xf32>
    %cst_58 = arith.constant 0.000000e+00 : f32
    %80 = vector.broadcast %cst_58 : f32 to vector<56x32xf32>
    %81 = arith.select %21, %79, %80 : vector<56x32xi1>, vector<56x32xf32>
    %c16_59 = arith.constant 16 : index
    %c0_60 = arith.constant 0 : index
    %82 = vector.load %arg14[%c16_59, %c0_60] : memref<88x32xf32, #tpu.memory_space<vmem>>, vector<56x32xf32>
    tpu.vector_store %arg14[%c16_59, %c0_60], %81 {strides = array<i32>} : memref<88x32xf32, #tpu.memory_space<vmem>>, vector<56x32xf32>,
    %c0_61 = arith.constant 0 : index
    %c0_62 = arith.constant 0 : index
    %83 = vector.load %arg14[%c0_61, %c0_62] : memref<88x32xf32, #tpu.memory_space<vmem>>, vector<88x32xf32>
    %84 = vector.extract_strided_slice %83 {offsets = [12, 0], sizes = [56, 32], strides = [1, 1]} : vector<88x32xf32> to vector<56x32xf32>
    %85 = vector.extract_strided_slice %83 {offsets = [14, 0], sizes = [56, 32], strides = [1, 1]} : vector<88x32xf32> to vector<56x32xf32>
    %86 = vector.extract_strided_slice %83 {offsets = [16, 0], sizes = [56, 32], strides = [1, 1]} : vector<88x32xf32> to vector<56x32xf32>
    %87 = vector.extract_strided_slice %83 {offsets = [18, 0], sizes = [56, 32], strides = [1, 1]} : vector<88x32xf32> to vector<56x32xf32>
    %88 = vector.extract_strided_slice %83 {offsets = [20, 0], sizes = [56, 32], strides = [1, 1]} : vector<88x32xf32> to vector<56x32xf32>
    %89 = tpu.concatenate %84, %85, %86, %87, %88 in 1 : vector<56x32xf32>, vector<56x32xf32>, vector<56x32xf32>, vector<56x32xf32>, vector<56x32xf32> -> vector<56x160xf32>
    %90 = arith.truncf %89 : vector<56x160xf32> to vector<56x160xbf16>
    %c0_63 = arith.constant 0 : index
    %c0_64 = arith.constant 0 : index
    %91 = vector.load %arg7[%c0_63, %c0_64] : memref<160x32xbf16, #tpu.memory_space<vmem>>, vector<160x32xbf16>
    %cst_65 = arith.constant dense<0.000000e+00> : vector<56x32xf32>
    %92 = tpu.matmul %90, %91, %cst_65 {dimension_numbers = #tpu.dot_dimension_numbers<[1], [0], [0], [1], [0, 0, 1, 1], [], []>} : vector<56x160xbf16>, vector<160x32xbf16>, vector<56x32xf32> -> vector<56x32xf32>
    %c0_66 = arith.constant 0 : index
    %c0_67 = arith.constant 0 : index
    %93 = vector.load %arg13[%c0_66, %c0_67] : memref<56x32xf32, #tpu.memory_space<vmem>>, vector<56x32xf32>
    %94 = arith.addf %93, %92 : vector<56x32xf32>
    %c0_68 = arith.constant 0 : index
    %c0_69 = arith.constant 0 : index
    %95 = vector.load %arg8[%c0_68, %c0_69] : memref<1x32xf32, #tpu.memory_space<vmem>>, vector<1x32xf32>
    %96 = vector.broadcast %95 : vector<1x32xf32> to vector<56x32xf32>
    %97 = arith.addf %94, %96 : vector<56x32xf32>
    %c0_70 = arith.constant 0 : index
    %c0_71 = arith.constant 0 : index
    %98 = vector.load %arg13[%c0_70, %c0_71] : memref<56x32xf32, #tpu.memory_space<vmem>>, vector<56x32xf32>
    tpu.vector_store %arg13[%c0_70, %c0_71], %97 {strides = array<i32>} : memref<56x32xf32, #tpu.memory_space<vmem>>, vector<56x32xf32>,
    %c0_72 = arith.constant 0 : index
    %c0_73 = arith.constant 0 : index
    %99 = vector.load %arg13[%c0_72, %c0_73] : memref<56x32xf32, #tpu.memory_space<vmem>>, vector<56x32xf32>
    %cst_74 = arith.constant 0.000000e+00 : f32
    %100 = vector.broadcast %cst_74 : f32 to vector<56x32xf32>
    %101 = arith.cmpf ogt, %99, %100 : vector<56x32xf32>
    %cst_75 = arith.constant 1.000000e-01 : f32
    %102 = vector.broadcast %cst_75 : f32 to vector<56x32xf32>
    %103 = arith.mulf %102, %99 : vector<56x32xf32>
    %104 = arith.select %101, %99, %103 : vector<56x32xi1>, vector<56x32xf32>
    %cst_76 = arith.constant 0.000000e+00 : f32
    %105 = vector.broadcast %cst_76 : f32 to vector<56x32xf32>
    %106 = arith.select %21, %104, %105 : vector<56x32xi1>, vector<56x32xf32>
    %c16_77 = arith.constant 16 : index
    %c0_78 = arith.constant 0 : index
    %107 = vector.load %arg14[%c16_77, %c0_78] : memref<88x32xf32, #tpu.memory_space<vmem>>, vector<56x32xf32>
    tpu.vector_store %arg14[%c16_77, %c0_78], %106 {strides = array<i32>} : memref<88x32xf32, #tpu.memory_space<vmem>>, vector<56x32xf32>,
    %c0_79 = arith.constant 0 : index
    %c0_80 = arith.constant 0 : index
    %108 = vector.load %arg14[%c0_79, %c0_80] : memref<88x32xf32, #tpu.memory_space<vmem>>, vector<88x32xf32>
    %109 = vector.extract_strided_slice %108 {offsets = [4, 0], sizes = [56, 32], strides = [1, 1]} : vector<88x32xf32> to vector<56x32xf32>
    %110 = vector.extract_strided_slice %108 {offsets = [10, 0], sizes = [56, 32], strides = [1, 1]} : vector<88x32xf32> to vector<56x32xf32>
    %111 = vector.extract_strided_slice %108 {offsets = [16, 0], sizes = [56, 32], strides = [1, 1]} : vector<88x32xf32> to vector<56x32xf32>
    %112 = vector.extract_strided_slice %108 {offsets = [22, 0], sizes = [56, 32], strides = [1, 1]} : vector<88x32xf32> to vector<56x32xf32>
    %113 = vector.extract_strided_slice %108 {offsets = [28, 0], sizes = [56, 32], strides = [1, 1]} : vector<88x32xf32> to vector<56x32xf32>
    %114 = tpu.concatenate %109, %110, %111, %112, %113 in 1 : vector<56x32xf32>, vector<56x32xf32>, vector<56x32xf32>, vector<56x32xf32>, vector<56x32xf32> -> vector<56x160xf32>
    %115 = arith.truncf %114 : vector<56x160xf32> to vector<56x160xbf16>
    %c0_81 = arith.constant 0 : index
    %c0_82 = arith.constant 0 : index
    %116 = vector.load %arg9[%c0_81, %c0_82] : memref<160x32xbf16, #tpu.memory_space<vmem>>, vector<160x32xbf16>
    %cst_83 = arith.constant dense<0.000000e+00> : vector<56x32xf32>
    %117 = tpu.matmul %115, %116, %cst_83 {dimension_numbers = #tpu.dot_dimension_numbers<[1], [0], [0], [1], [0, 0, 1, 1], [], []>} : vector<56x160xbf16>, vector<160x32xbf16>, vector<56x32xf32> -> vector<56x32xf32>
    %c0_84 = arith.constant 0 : index
    %c0_85 = arith.constant 0 : index
    %118 = vector.load %arg13[%c0_84, %c0_85] : memref<56x32xf32, #tpu.memory_space<vmem>>, vector<56x32xf32>
    %119 = arith.addf %118, %117 : vector<56x32xf32>
    %c0_86 = arith.constant 0 : index
    %c0_87 = arith.constant 0 : index
    %120 = vector.load %arg10[%c0_86, %c0_87] : memref<1x32xf32, #tpu.memory_space<vmem>>, vector<1x32xf32>
    %121 = vector.broadcast %120 : vector<1x32xf32> to vector<56x32xf32>
    %122 = arith.addf %119, %121 : vector<56x32xf32>
    %c0_88 = arith.constant 0 : index
    %c0_89 = arith.constant 0 : index
    %123 = vector.load %arg13[%c0_88, %c0_89] : memref<56x32xf32, #tpu.memory_space<vmem>>, vector<56x32xf32>
    tpu.vector_store %arg13[%c0_88, %c0_89], %122 {strides = array<i32>} : memref<56x32xf32, #tpu.memory_space<vmem>>, vector<56x32xf32>,
    %c0_90 = arith.constant 0 : index
    %c0_91 = arith.constant 0 : index
    %124 = vector.load %arg12[%c0_90, %c0_91] : memref<56x32xf32, #tpu.memory_space<vmem>>, vector<56x32xf32>
    %c0_92 = arith.constant 0 : index
    %c0_93 = arith.constant 0 : index
    %125 = vector.load %arg13[%c0_92, %c0_93] : memref<56x32xf32, #tpu.memory_space<vmem>>, vector<56x32xf32>
    %126 = arith.addf %124, %125 : vector<56x32xf32>
    %c0_94 = arith.constant 0 : index
    %c0_95 = arith.constant 0 : index
    %127 = vector.load %arg12[%c0_94, %c0_95] : memref<56x32xf32, #tpu.memory_space<vmem>>, vector<56x32xf32>
    tpu.vector_store %arg12[%c0_94, %c0_95], %126 {strides = array<i32>} : memref<56x32xf32, #tpu.memory_space<vmem>>, vector<56x32xf32>,
    %c20 = arith.constant 20 : index
    %c0_96 = arith.constant 0 : index
    %128 = vector.load %arg12[%c20, %c0_96] : memref<56x32xf32, #tpu.memory_space<vmem>>, vector<16x32xf32>
    %cst_97 = arith.constant 5.000000e-01 : f32
    %129 = vector.broadcast %cst_97 : f32 to vector<16x32xf32>
    %130 = arith.mulf %128, %129 : vector<16x32xf32>
    %c0_98 = arith.constant 0 : index
    %c0_99 = arith.constant 0 : index
    %c0_100 = arith.constant 0 : index
    %131 = vector.load %arg11[%c0_98, %c0_99, %c0_100] : memref<1x16x32xf32, #tpu.memory_space<vmem>>, vector<1x16x32xf32>
    %132 = vector.shape_cast %131 : vector<1x16x32xf32> to vector<16x32xf32>
    %133 = vector.shape_cast %130 : vector<16x32xf32> to vector<1x16x32xf32>
    tpu.vector_store %arg11[%c0_98, %c0_99, %c0_100], %133 {strides = array<i32>} : memref<1x16x32xf32, #tpu.memory_space<vmem>>, vector<1x16x32xf32>,
    return
  }
  func.func @transform_1(%arg0: i32, %arg1: i32) -> (i32, i32) {
    %c0_i32 = arith.constant 0 : i32
    %c0_i32_0 = arith.constant 0 : i32
    %c0_i32_1 = arith.constant 0 : i32
    return %c0_i32, %c0_i32_0 : i32, i32
  }
  func.func @transform_2(%arg0: i32, %arg1: i32) -> (i32, i32) {
    %c0_i32 = arith.constant 0 : i32
    %c0_i32_0 = arith.constant 0 : i32
    %c0_i32_1 = arith.constant 0 : i32
    return %c0_i32, %c0_i32_0 : i32, i32
  }
  func.func @transform_3(%arg0: i32, %arg1: i32) -> (i32, i32) {
    %c0_i32 = arith.constant 0 : i32
    %c0_i32_0 = arith.constant 0 : i32
    %c0_i32_1 = arith.constant 0 : i32
    return %c0_i32, %c0_i32_0 : i32, i32
  }
  func.func @transform_4(%arg0: i32, %arg1: i32) -> (i32, i32) {
    %c0_i32 = arith.constant 0 : i32
    %c0_i32_0 = arith.constant 0 : i32
    %c0_i32_1 = arith.constant 0 : i32
    return %c0_i32, %c0_i32_0 : i32, i32
  }
  func.func @transform_5(%arg0: i32, %arg1: i32) -> (i32, i32) {
    %c0_i32 = arith.constant 0 : i32
    %c0_i32_0 = arith.constant 0 : i32
    %c0_i32_1 = arith.constant 0 : i32
    return %c0_i32, %c0_i32_0 : i32, i32
  }
  func.func @transform_6(%arg0: i32, %arg1: i32) -> (i32, i32) {
    %c0_i32 = arith.constant 0 : i32
    %c0_i32_0 = arith.constant 0 : i32
    %c0_i32_1 = arith.constant 0 : i32
    return %c0_i32, %c0_i32_0 : i32, i32
  }
  func.func @transform_7(%arg0: i32, %arg1: i32) -> (i32, i32) {
    %c0_i32 = arith.constant 0 : i32
    %c0_i32_0 = arith.constant 0 : i32
    %c0_i32_1 = arith.constant 0 : i32
    return %c0_i32, %c0_i32_0 : i32, i32
  }
  func.func @transform_8(%arg0: i32, %arg1: i32) -> (i32, i32) {
    %c0_i32 = arith.constant 0 : i32
    %c0_i32_0 = arith.constant 0 : i32
    %c0_i32_1 = arith.constant 0 : i32
    return %c0_i32, %c0_i32_0 : i32, i32
  }
  func.func @transform_9(%arg0: i32, %arg1: i32) -> (i32, i32, i32) {
    %c0_i32 = arith.constant 0 : i32
    %c0_i32_0 = arith.constant 0 : i32
    return %arg0, %arg1, %c0_i32 : i32, i32, i32
  }
}

</mosaic_0001>

<llo_original>
// kernel: tpu_custom_call.1
$region0: #{tpu_custom_call.1}
  #allocation0 [shape = 'u32[]', space=smem, size = 0x4, offset = 0x4, fixed_abs, tag = 'smem constant byte address 0x4 - core index']
  #allocation1 [shape = 'u32[72,128]{1,0:T(1,128)}', space=vmem, size = 0x9000, scoped, tag = 'internal scratch']
  #allocation2 [shape = 'f32[56,32]{1,0:T(8,128)}', space=vmem, size = 0x7000, scoped, tag = 'scratch operand']
  #allocation3 [shape = 'f32[56,32]{1,0:T(8,128)}', space=vmem, size = 0x7000, scoped, tag = 'scratch operand']
  #allocation4 [shape = 'f32[88,32]{1,0:T(8,128)}', space=vmem, size = 0xb000, scoped, tag = 'scratch operand']
  #allocation5 [shape = 's32[1]{0}', space=sflag, size = 0x4, scoped, tag = 'scratch operand']
  #allocation8 [shape = 's32[]', space=sflag, size = 0x4, offset = 0, fixed_abs, tag = 'sflag constant byte address 0x0 - dummy sync flag']
  %s0 = inlined_call_operand.vmem [shape: f32[112,32], index: 0, kind: input, shape index: {}]
  %s1 = inlined_call_operand.vmem [shape: bf16[96,32], index: 1, kind: input, shape index: {}]
  %s2 = inlined_call_operand.vmem [shape: f32[1,32], index: 2, kind: input, shape index: {}]
  %s3 = inlined_call_operand.vmem [shape: bf16[96,32], index: 3, kind: input, shape index: {}]
  %s4 = inlined_call_operand.vmem [shape: f32[1,32], index: 4, kind: input, shape index: {}]
  %s5 = inlined_call_operand.vmem [shape: bf16[160,32], index: 5, kind: input, shape index: {}]
  %s6 = inlined_call_operand.vmem [shape: f32[1,32], index: 6, kind: input, shape index: {}]
  %s7 = inlined_call_operand.vmem [shape: bf16[160,32], index: 7, kind: input, shape index: {}]
  %s8 = inlined_call_operand.vmem [shape: f32[1,32], index: 8, kind: input, shape index: {}]
  %s9 = inlined_call_operand.hbm [shape: f32[2,16,32], index: 9, kind: output, shape index: {}]
  %s10 = sld [smem:[#allocation0]]
  $region84: #{tpu_custom_call.1} parent=0
    _
  %s12 = ssub.s32 1, %s10
  %s13 = scalar_select 0, %s12, %s10
  $region1: #{tpu_custom_call.1} parent=0
    #allocation6 [shape = 'u8[16384]{0}', space=vmem, size = 0x4000, scoped, tag = 'output window, operand 0']
    #allocation7 [shape = 's32[2]{0}', space=sflag, size = 0x8, scoped, tag = 'scoped memory for tpu_custom_call.1']
    %14 = vsyncpa [#allocation7], 0
    %s15 = scalar_lea.sflag [#allocation7], 1
    %16 = vsyncpa %s15, 0
    loop: start=0, step=1, limit=4
    $region2: #{tpu_custom_call.1} parent=1 // loop_pre_header
      _
    $region3: #{tpu_custom_call.1} parent=1 // loop_header
      %s18 = sphi 0, %s22
      %p19 = scmp.ge.s32.totalorder %s18, 4
      %s25 = sphi 0, %s37
      %s26 = sphi 0, %s33
      %s27 = sphi 0, %s25
      %s28 = sphi 0, %s26
      %s29 = sphi 0, %s27
      %s30 = sphi 0, %s28
      %s38 = sphi 0, %s38
      %s40 = sphi 0, %s38
      %s41 = sphi 0, %s40
      %s55 = sphi 0, %s41
      %s59 = sphi 0, %s59
      %s61 = sphi 0, %s59
      %s62 = sphi 0, %s61
      %s76 = sphi 0, %s62
      %s80 = sphi 0, %s80
      %s82 = sphi 0, %s80
      %s83 = sphi 0, %s82
      %s97 = sphi 0, %s83
      %s101 = sphi 0, %s101
      %s103 = sphi 0, %s101
      %s104 = sphi 0, %s103
      %s118 = sphi 0, %s104
      %s122 = sphi 0, %s122
      %s124 = sphi 0, %s122
      %s125 = sphi 0, %s124
      %s139 = sphi 0, %s125
      %s143 = sphi 0, %s143
      %s145 = sphi 0, %s143
      %s146 = sphi 0, %s145
      %s160 = sphi 0, %s146
      %s164 = sphi 0, %s164
      %s166 = sphi 0, %s164
      %s167 = sphi 0, %s166
      %s181 = sphi 0, %s167
      %s185 = sphi 0, %s185
      %s187 = sphi 0, %s185
      %s188 = sphi 0, %s187
      %s202 = sphi 0, %s188
      %s210 = sphi 0, %s212
      %s213 = sphi 0, %s210
      %s214 = sphi 0, %s213
      %s230 = sphi 0, %s214
    $region4: #{tpu_custom_call.1} parent=1 // loop_header_branch
      %21 = sbr.rel (%p19) target = $region8
    $region5: #{tpu_custom_call.1} parent=1 // loop_body
      %s23 = ssub.s32 %s18, 1
      %s24 = ssub.s32 %s18, 2
      %s31 = sadd.s32 1, %s26
      %p32 = scmp.ge.s32.totalorder %s31, 1
      %s33 = scalar_select %p32, 0, %s31
      %s34 = sadd.s32 1, %s25
      %s35 = scalar_select %p32, %s34, %s25
      %p36 = scmp.ge.s32.totalorder %s35, 2
      %s37 = scalar_select %p36, 0, %s35
      %s39 = sadd.s32 %s38, 1
      %p42 = scmp.eq.s32.totalorder %s18, 1
      %p43 = scmp.ne.s32.totalorder %s38, %s40
      %p44 = scmp.eq.s32.totalorder %s18, 0
      %p45 = por %p43, %p44
      %p46 = scmp.ne.s32.totalorder %s38, %s40
      %p47 = scmp.eq.s32.totalorder %s23, 1
      %p48 = por %p46, %p47
      %p49 = scmp.ne.s32.totalorder %s40, %s41
      %p50 = scmp.eq.s32.totalorder %s23, 0
      %p51 = por %p49, %p50
      %p52 = scmp.ne.s32.totalorder %s40, %s41
      %p53 = scmp.eq.s32.totalorder %s24, 1
      %p54 = por %p52, %p53
      %p56 = scmp.ne.s32.totalorder %s41, %s55
      %p57 = scmp.eq.s32.totalorder %s24, 0
      %p58 = por %p56, %p57
      %s60 = sadd.s32 %s59, 1
      %p63 = scmp.eq.s32.totalorder %s18, 1
      %p64 = scmp.ne.s32.totalorder %s59, %s61
      %p65 = scmp.eq.s32.totalorder %s18, 0
      %p66 = por %p64, %p65
      %p67 = scmp.ne.s32.totalorder %s59, %s61
      %p68 = scmp.eq.s32.totalorder %s23, 1
      %p69 = por %p67, %p68
      %p70 = scmp.ne.s32.totalorder %s61, %s62
      %p71 = scmp.eq.s32.totalorder %s23, 0
      %p72 = por %p70, %p71
      %p73 = scmp.ne.s32.totalorder %s61, %s62
      %p74 = scmp.eq.s32.totalorder %s24, 1
      %p75 = por %p73, %p74
      %p77 = scmp.ne.s32.totalorder %s62, %s76
      %p78 = scmp.eq.s32.totalorder %s24, 0
      %p79 = por %p77, %p78
      %s81 = sadd.s32 %s80, 1
      %p84 = scmp.eq.s32.totalorder %s18, 1
      %p85 = scmp.ne.s32.totalorder %s80, %s82
      %p86 = scmp.eq.s32.totalorder %s18, 0
      %p87 = por %p85, %p86
      %p88 = scmp.ne.s32.totalorder %s80, %s82
      %p89 = scmp.eq.s32.totalorder %s23, 1
      %p90 = por %p88, %p89
      %p91 = scmp.ne.s32.totalorder %s82, %s83
      %p92 = scmp.eq.s32.totalorder %s23, 0
      %p93 = por %p91, %p92
      %p94 = scmp.ne.s32.totalorder %s82, %s83
      %p95 = scmp.eq.s32.totalorder %s24, 1
      %p96 = por %p94, %p95
      %p98 = scmp.ne.s32.totalorder %s83, %s97
      %p99 = scmp.eq.s32.totalorder %s24, 0
      %p100 = por %p98, %p99
      %s102 = sadd.s32 %s101, 1
      %p105 = scmp.eq.s32.totalorder %s18, 1
      %p106 = scmp.ne.s32.totalorder %s101, %s103
      %p107 = scmp.eq.s32.totalorder %s18, 0
      %p108 = por %p106, %p107
      %p109 = scmp.ne.s32.totalorder %s101, %s103
      %p110 = scmp.eq.s32.totalorder %s23, 1
      %p111 = por %p109, %p110
      %p112 = scmp.ne.s32.totalorder %s103, %s104
      %p113 = scmp.eq.s32.totalorder %s23, 0
      %p114 = por %p112, %p113
      %p115 = scmp.ne.s32.totalorder %s103, %s104
      %p116 = scmp.eq.s32.totalorder %s24, 1
      %p117 = por %p115, %p116
      %p119 = scmp.ne.s32.totalorder %s104, %s118
      %p120 = scmp.eq.s32.totalorder %s24, 0
      %p121 = por %p119, %p120
      %s123 = sadd.s32 %s122, 1
      %p126 = scmp.eq.s32.totalorder %s18, 1
      %p127 = scmp.ne.s32.totalorder %s122, %s124
      %p128 = scmp.eq.s32.totalorder %s18, 0
      %p129 = por %p127, %p128
      %p130 = scmp.ne.s32.totalorder %s122, %s124
      %p131 = scmp.eq.s32.totalorder %s23, 1
      %p132 = por %p130, %p131
      %p133 = scmp.ne.s32.totalorder %s124, %s125
      %p134 = scmp.eq.s32.totalorder %s23, 0
      %p135 = por %p133, %p134
      %p136 = scmp.ne.s32.totalorder %s124, %s125
      %p137 = scmp.eq.s32.totalorder %s24, 1
      %p138 = por %p136, %p137
      %p140 = scmp.ne.s32.totalorder %s125, %s139
      %p141 = scmp.eq.s32.totalorder %s24, 0
      %p142 = por %p140, %p141
      %s144 = sadd.s32 %s143, 1
      %p147 = scmp.eq.s32.totalorder %s18, 1
      %p148 = scmp.ne.s32.totalorder %s143, %s145
      %p149 = scmp.eq.s32.totalorder %s18, 0
      %p150 = por %p148, %p149
      %p151 = scmp.ne.s32.totalorder %s143, %s145
      %p152 = scmp.eq.s32.totalorder %s23, 1
      %p153 = por %p151, %p152
      %p154 = scmp.ne.s32.totalorder %s145, %s146
      %p155 = scmp.eq.s32.totalorder %s23, 0
      %p156 = por %p154, %p155
      %p157 = scmp.ne.s32.totalorder %s145, %s146
      %p158 = scmp.eq.s32.totalorder %s24, 1
      %p159 = por %p157, %p158
      %p161 = scmp.ne.s32.totalorder %s146, %s160
      %p162 = scmp.eq.s32.totalorder %s24, 0
      %p163 = por %p161, %p162
      %s165 = sadd.s32 %s164, 1
      %p168 = scmp.eq.s32.totalorder %s18, 1
      %p169 = scmp.ne.s32.totalorder %s164, %s166
      %p170 = scmp.eq.s32.totalorder %s18, 0
      %p171 = por %p169, %p170
      %p172 = scmp.ne.s32.totalorder %s164, %s166
      %p173 = scmp.eq.s32.totalorder %s23, 1
      %p174 = por %p172, %p173
      %p175 = scmp.ne.s32.totalorder %s166, %s167
      %p176 = scmp.eq.s32.totalorder %s23, 0
      %p177 = por %p175, %p176
      %p178 = scmp.ne.s32.totalorder %s166, %s167
      %p179 = scmp.eq.s32.totalorder %s24, 1
      %p180 = por %p178, %p179
      %p182 = scmp.ne.s32.totalorder %s167, %s181
      %p183 = scmp.eq.s32.totalorder %s24, 0
      %p184 = por %p182, %p183
      %s186 = sadd.s32 %s185, 1
      %p189 = scmp.eq.s32.totalorder %s18, 1
      %p190 = scmp.ne.s32.totalorder %s185, %s187
      %p191 = scmp.eq.s32.totalorder %s18, 0
      %p192 = por %p190, %p191
      %p193 = scmp.ne.s32.totalorder %s185, %s187
      %p194 = scmp.eq.s32.totalorder %s23, 1
      %p195 = por %p193, %p194
      %p196 = scmp.ne.s32.totalorder %s187, %s188
      %p197 = scmp.eq.s32.totalorder %s23, 0
      %p198 = por %p196, %p197
      %p199 = scmp.ne.s32.totalorder %s187, %s188
      %p200 = scmp.eq.s32.totalorder %s24, 1
      %p201 = por %p199, %p200
      %p203 = scmp.ne.s32.totalorder %s188, %s202
      %p204 = scmp.eq.s32.totalorder %s24, 0
      %p205 = por %p203, %p204
      %s206 = ssub.s32 %s25, %s37
      %s207 = ssub.s32 %s26, %s33
      %s208 = sor.u32 %s206, %s207
      %p209 = scmp.eq.s32.totalorder %s208, 0
      %s211 = sadd.s32 %s210, 1
      %s212 = scalar_select %p209, %s210, %s211
      %p215 = pneg %p209
      %p216 = scmp.eq.s32.totalorder %s18, 1
      %p217 = por %p215, %p216
      %p218 = scmp.ne.s32.totalorder %s210, %s213
      %p219 = scmp.eq.s32.totalorder %s18, 0
      %p220 = por %p218, %p219
      %p221 = scmp.ne.s32.totalorder %s210, %s213
      %p222 = scmp.eq.s32.totalorder %s23, 1
      %p223 = por %p221, %p222
      %p224 = scmp.ne.s32.totalorder %s213, %s214
      %p225 = scmp.eq.s32.totalorder %s23, 0
      %p226 = por %p224, %p225
      %p227 = scmp.ne.s32.totalorder %s213, %s214
      %p228 = scmp.eq.s32.totalorder %s24, 1
      %p229 = por %p227, %p228
      %p231 = scmp.ne.s32.totalorder %s214, %s230
      %p232 = scmp.eq.s32.totalorder %s24, 0
      %p233 = por %p231, %p232
      %p234 = scmp.le.s32.totalorder 1, %s18
      %p235 = scmp.lt.s32.totalorder %s18, 3
      %p236 = pnand %p234, %p235
      %p237 = pneg %p236
      // Predicated region
      $region9: #{tpu_custom_call.1} parent=5 // pred_check
        _
      $region10: #{tpu_custom_call.1} parent=5 // pred_check_branch
        %239 = sbr.rel (%p236) target = $region12
      $region11: #{tpu_custom_call.1} parent=5 // pred_region
        %s240 = ssub.s32 %s18, 1
        // Predicated region
        $region13: #{tpu_custom_call.1} parent=11 // pred_check
          %p241 = pneg %p51
        $region14: #{tpu_custom_call.1} parent=11 // pred_check_branch
          %243 = sbr.rel (%p241) target = $region16
        $region15: #{tpu_custom_call.1} parent=11 // pred_region
          _
        $region16: #{tpu_custom_call.1} parent=11 // pred_fallthru
          _
        // Predicated region
        $region17: #{tpu_custom_call.1} parent=11 // pred_check
          %p244 = pneg %p72
        $region18: #{tpu_custom_call.1} parent=11 // pred_check_branch
          %246 = sbr.rel (%p244) target = $region20
        $region19: #{tpu_custom_call.1} parent=11 // pred_region
          _
        $region20: #{tpu_custom_call.1} parent=11 // pred_fallthru
          _
        // Predicated region
        $region21: #{tpu_custom_call.1} parent=11 // pred_check
          %p247 = pneg %p93
        $region22: #{tpu_custom_call.1} parent=11 // pred_check_branch
          %249 = sbr.rel (%p247) target = $region24
        $region23: #{tpu_custom_call.1} parent=11 // pred_region
          _
        $region24: #{tpu_custom_call.1} parent=11 // pred_fallthru
          _
        // Predicated region
        $region25: #{tpu_custom_call.1} parent=11 // pred_check
          %p250 = pneg %p114
        $region26: #{tpu_custom_call.1} parent=11 // pred_check_branch
          %252 = sbr.rel (%p250) target = $region28
        $region27: #{tpu_custom_call.1} parent=11 // pred_region
          _
        $region28: #{tpu_custom_call.1} parent=11 // pred_fallthru
          _
        // Predicated region
        $region29: #{tpu_custom_call.1} parent=11 // pred_check
          %p253 = pneg %p135
        $region30: #{tpu_custom_call.1} parent=11 // pred_check_branch
          %255 = sbr.rel (%p253) target = $region32
        $region31: #{tpu_custom_call.1} parent=11 // pred_region
          _
        $region32: #{tpu_custom_call.1} parent=11 // pred_fallthru
          _
        // Predicated region
        $region33: #{tpu_custom_call.1} parent=11 // pred_check
          %p256 = pneg %p156
        $region34: #{tpu_custom_call.1} parent=11 // pred_check_branch
          %258 = sbr.rel (%p256) target = $region36
        $region35: #{tpu_custom_call.1} parent=11 // pred_region
          _
        $region36: #{tpu_custom_call.1} parent=11 // pred_fallthru
          _
        // Predicated region
        $region37: #{tpu_custom_call.1} parent=11 // pred_check
          %p259 = pneg %p177
        $region38: #{tpu_custom_call.1} parent=11 // pred_check_branch
          %261 = sbr.rel (%p259) target = $region40
        $region39: #{tpu_custom_call.1} parent=11 // pred_region
          _
        $region40: #{tpu_custom_call.1} parent=11 // pred_fallthru
          _
        // Predicated region
        $region41: #{tpu_custom_call.1} parent=11 // pred_check
          %p262 = pneg %p198
        $region42: #{tpu_custom_call.1} parent=11 // pred_check_branch
          %264 = sbr.rel (%p262) target = $region44
        $region43: #{tpu_custom_call.1} parent=11 // pred_region
          _
        $region44: #{tpu_custom_call.1} parent=11 // pred_fallthru
          _
      $region12: #{tpu_custom_call.1} parent=5 // pred_fallthru
        _
      %p265 = scmp.lt.s32.totalorder %s18, 2
      // Predicated region
      $region45: #{tpu_custom_call.1} parent=5 // pred_check
        %p266 = pneg %p265
      $region46: #{tpu_custom_call.1} parent=5 // pred_check_branch
        %268 = sbr.rel (%p266) target = $region48
      $region47: #{tpu_custom_call.1} parent=5 // pred_region
        _
      $region48: #{tpu_custom_call.1} parent=5 // pred_fallthru
        _
      %p269 = scmp.le.s32.totalorder 1, %s18
      %p270 = scmp.lt.s32.totalorder %s18, 3
      %p271 = pnand %p269, %p270
      %p272 = pneg %p271
      // Predicated region
      $region49: #{tpu_custom_call.1} parent=5 // pred_check
        _
      $region50: #{tpu_custom_call.1} parent=5 // pred_check_branch
        %274 = sbr.rel (%p271) target = $region52
      $region51: #{tpu_custom_call.1} parent=5 // pred_region
        %s275 = ssub.s32 %s18, 1
        %p276 = pneg %p51
        %p277 = pneg %p48
        %p278 = pneg %p72
        %p279 = pneg %p69
        %p280 = pneg %p93
        %p281 = pneg %p90
        %p282 = pneg %p114
        %p283 = pneg %p111
        %p284 = pneg %p135
        %p285 = pneg %p132
        %p286 = pneg %p156
        %p287 = pneg %p153
        %p288 = pneg %p177
        %p289 = pneg %p174
        %p290 = pneg %p198
        %p291 = pneg %p195
        %p292 = pneg %p226
        %p293 = pneg %p223
        %s294 = sand.u32 %s213, 1
        %s295 = scalar_lea.sflag [#allocation7], %s294
        %s296 = sand.u32 %s213, 1
        %s297 = smul.addr %s296, 16
        %s298 = scalar_lea.vmem [#allocation6], %s297
        %s299 = smul.u32 2, %s28
        %s301 = smul.u32 %s27, 56
        %s302 = smul.u32 %s28, 16
        %s303 = sadd.s32 %s301, %s302
        %s304 = scalar_lea.vmem %s0, %s303
        // Predicated region
        $region53: #{tpu_custom_call.1} parent=51 // pred_check
          _
        $region54: #{tpu_custom_call.1} parent=51 // pred_check_branch
          %306 = sbr.rel (0) target = $region56
        $region55: #{tpu_custom_call.1} parent=51 // pred_region
          loop: start=0, step=1, limit=1
          $region57: #{tpu_custom_call.1} parent=55 // loop_pre_header
            _
          $region58: #{tpu_custom_call.1} parent=55 // loop_header
            %s308 = sphi 0, %s312
            %p309 = scmp.ge.s32.totalorder %s308, 1
            %s313 = sphi %s304, %s304
            %s314 = sphi [#allocation2], [#allocation2]
          $region59: #{tpu_custom_call.1} parent=55 // loop_header_branch
            %311 = sbr.rel (%p309) target = $region63
          $region60: #{tpu_custom_call.1} parent=55 // loop_body
            %v315 = vld [vmem:[%s313] sm:$0xff]
            %316 = vst [vmem:[%s314] sm:$0xff] %v315
            %v317 = vld [vmem:[%s313 + $0x8] sm:$0xff]
            %318 = vst [vmem:[%s314 + $0x8] sm:$0xff] %v317
            %v319 = vld [vmem:[%s313 + $0x10] sm:$0xff]
            %320 = vst [vmem:[%s314 + $0x10] sm:$0xff] %v319
            %v321 = vld [vmem:[%s313 + $0x18] sm:$0xff]
            %322 = vst [vmem:[%s314 + $0x18] sm:$0xff] %v321
            %v323 = vld [vmem:[%s313 + $0x20] sm:$0xff]
            %324 = vst [vmem:[%s314 + $0x20] sm:$0xff] %v323
            %v325 = vld [vmem:[%s313 + $0x28] sm:$0xff]
            %326 = vst [vmem:[%s314 + $0x28] sm:$0xff] %v325
            %v327 = vld [vmem:[%s313 + $0x30] sm:$0xff]
            %328 = vst [vmem:[%s314 + $0x30] sm:$0xff] %v327
          $region61: #{tpu_custom_call.1} parent=55 // loop_footer
            %s312 = sadd.s32 1, %s308
          $region62: #{tpu_custom_call.1} parent=55 // loop_footer_branch
            %307 = sbr.rel target = $region58
          $region63: #{tpu_custom_call.1} parent=55 // loop_exit
            _
        $region56: #{tpu_custom_call.1} parent=51 // pred_fallthru
          _
        // Predicated region
        $region64: #{tpu_custom_call.1} parent=51 // pred_check
          _
        $region65: #{tpu_custom_call.1} parent=51 // pred_check_branch
          %330 = sbr.rel target = $region67
        $region66: #{tpu_custom_call.1} parent=51 // pred_region
          _
        $region67: #{tpu_custom_call.1} parent=51 // pred_fallthru
          _
        // Predicated region
        $region68: #{tpu_custom_call.1} parent=51 // pred_check
          _
        $region69: #{tpu_custom_call.1} parent=51 // pred_check_branch
          %333 = sbr.rel (0) target = $region71
        $region70: #{tpu_custom_call.1} parent=51 // pred_region
          %334 = vsyncadd [#allocation5], 896
        $region71: #{tpu_custom_call.1} parent=51 // pred_fallthru
          _
        %s335 = smul.u32 56, 1
        %s336 = sshll.u32 %s335, 4
        %337 = dma.done [#allocation5], %s336
        %vm338 = vcmask 261120
        %339 = vst.msk [vmem:[#allocation4] sm:$0xff] %vm338, 0.0
        %340 = vst.msk [vmem:[#allocation4 + $0x8] sm:$0xff] %vm338, 0.0
        %341 = vst.msk [vmem:[#allocation4 + $0x10] sm:$0xff] %vm338, 0.0
        %342 = vst.msk [vmem:[#allocation4 + $0x18] sm:$0xff] %vm338, 0.0
        %343 = vst.msk [vmem:[#allocation4 + $0x20] sm:$0xff] %vm338, 0.0
        %344 = vst.msk [vmem:[#allocation4 + $0x28] sm:$0xff] %vm338, 0.0
        %345 = vst.msk [vmem:[#allocation4 + $0x30] sm:$0xff] %vm338, 0.0
        %346 = vst.msk [vmem:[#allocation4 + $0x38] sm:$0xff] %vm338, 0.0
        %347 = vst.msk [vmem:[#allocation4 + $0x40] sm:$0xff] %vm338, 0.0
        %348 = vst.msk [vmem:[#allocation4 + $0x48] sm:$0xff] %vm338, 0.0
        %349 = vst.msk [vmem:[#allocation4 + $0x50] sm:$0xff] %vm338, 0.0
        %v350 = vlaneseq
        %v351 = vshrl.u32 %v350, 7
        %v352 = vadd.s32 %v351, 8
        %v353 = vadd.s32 %v351, 16
        %v354 = vadd.s32 %v351, 24
        %v355 = vadd.s32 %v351, 32
        %v356 = vadd.s32 %v351, 40
        %v357 = vadd.s32 %v351, 48
        %s358 = ssub.s32 %s302, 20
        %v359 = vstv %s358
        %v360 = vadd.s32 %v351, %v359
        %v361 = vadd.s32 %v352, %v359
        %v362 = vadd.s32 %v353, %v359
        %v363 = vadd.s32 %v354, %v359
        %v364 = vadd.s32 %v355, %v359
        %v365 = vadd.s32 %v356, %v359
        %v366 = vadd.s32 %v357, %v359
        %vm367 = vcmp.ge.s32.totalorder %v360, 0
        %vm368 = vcmp.ge.s32.totalorder %v361, 0
        %vm369 = vcmp.ge.s32.totalorder %v362, 0
        %vm370 = vcmp.ge.s32.totalorder %v363, 0
        %vm371 = vcmp.ge.s32.totalorder %v364, 0
        %vm372 = vcmp.ge.s32.totalorder %v365, 0
        %vm373 = vcmp.ge.s32.totalorder %v366, 0
        %vm374 = vcmp.lt.s32.totalorder %v360, 16
        %vm375 = vcmp.lt.s32.totalorder %v361, 16
        %vm376 = vcmp.lt.s32.totalorder %v362, 16
        %vm377 = vcmp.lt.s32.totalorder %v363, 16
        %vm378 = vcmp.lt.s32.totalorder %v364, 16
        %vm379 = vcmp.lt.s32.totalorder %v365, 16
        %vm380 = vcmp.lt.s32.totalorder %v366, 16
        %vm381 = vmand %vm367, %vm374
        %vm382 = vmand %vm368, %vm375
        %vm383 = vmand %vm369, %vm376
        %vm384 = vmand %vm370, %vm377
        %vm385 = vmand %vm371, %vm378
        %vm386 = vmand %vm372, %vm379
        %vm387 = vmand %vm373, %vm380
        %v388 = vld [vmem:[#allocation2] sm:$0xff]
        %v389 = vld [vmem:[#allocation2 + $0x8] sm:$0xff]
        %v390 = vld [vmem:[#allocation2 + $0x10] sm:$0xff]
        %v391 = vld [vmem:[#allocation2 + $0x18] sm:$0xff]
        %v392 = vld [vmem:[#allocation2 + $0x20] sm:$0xff]
        %v393 = vld [vmem:[#allocation2 + $0x28] sm:$0xff]
        %v394 = vld [vmem:[#allocation2 + $0x30] sm:$0xff]
        %395 = vst.msk [vmem:[#allocation3] sm:$0xff] %vm338, %v388
        %396 = vst.msk [vmem:[#allocation3 + $0x8] sm:$0xff] %vm338, %v389
        %397 = vst.msk [vmem:[#allocation3 + $0x10] sm:$0xff] %vm338, %v390
        %398 = vst.msk [vmem:[#allocation3 + $0x18] sm:$0xff] %vm338, %v391
        %399 = vst.msk [vmem:[#allocation3 + $0x20] sm:$0xff] %vm338, %v392
        %400 = vst.msk [vmem:[#allocation3 + $0x28] sm:$0xff] %vm338, %v393
        %401 = vst.msk [vmem:[#allocation3 + $0x30] sm:$0xff] %vm338, %v394
        %v402 = vld [vmem:[#allocation3] sm:$0xff]
        %v403 = vld [vmem:[#allocation3 + $0x8] sm:$0xff]
        %v404 = vld [vmem:[#allocation3 + $0x10] sm:$0xff]
        %v405 = vld [vmem:[#allocation3 + $0x18] sm:$0xff]
        %v406 = vld [vmem:[#allocation3 + $0x20] sm:$0xff]
        %v407 = vld [vmem:[#allocation3 + $0x28] sm:$0xff]
        %v408 = vld [vmem:[#allocation3 + $0x30] sm:$0xff]
        %vm409 = vcmp.gt.f32.partialorder %v402, 0.0
        %vm410 = vcmp.gt.f32.partialorder %v403, 0.0
        %vm411 = vcmp.gt.f32.partialorder %v404, 0.0
        %vm412 = vcmp.gt.f32.partialorder %v405, 0.0
        %vm413 = vcmp.gt.f32.partialorder %v406, 0.0
        %vm414 = vcmp.gt.f32.partialorder %v407, 0.0
        %vm415 = vcmp.gt.f32.partialorder %v408, 0.0
        %v416 = vmul.f32 %v402, 0.1
        %v417 = vmul.f32 %v403, 0.1
        %v418 = vmul.f32 %v404, 0.1
        %v419 = vmul.f32 %v405, 0.1
        %v420 = vmul.f32 %v406, 0.1
        %v421 = vmul.f32 %v407, 0.1
        %v422 = vmul.f32 %v408, 0.1
        %v423 = vsel %vm409, %v402, %v416
        %v424 = vsel %vm410, %v403, %v417
        %v425 = vsel %vm411, %v404, %v418
        %v426 = vsel %vm412, %v405, %v419
        %v427 = vsel %vm413, %v406, %v420
        %v428 = vsel %vm414, %v407, %v421
        %v429 = vsel %vm415, %v408, %v422
        %v430 = vsel %vm381, %v423, 0.0
        %v431 = vsel %vm382, %v424, 0.0
        %v432 = vsel %vm383, %v425, 0.0
        %v433 = vsel %vm384, %v426, 0.0
        %v434 = vsel %vm385, %v427, 0.0
        %v435 = vsel %vm386, %v428, 0.0
        %v436 = vsel %vm387, %v429, 0.0
        %437 = vst.msk [vmem:[#allocation4 + $0x10] sm:$0xff] %vm338, %v430
        %438 = vst.msk [vmem:[#allocation4 + $0x18] sm:$0xff] %vm338, %v431
        %439 = vst.msk [vmem:[#allocation4 + $0x20] sm:$0xff] %vm338, %v432
        %440 = vst.msk [vmem:[#allocation4 + $0x28] sm:$0xff] %vm338, %v433
        %441 = vst.msk [vmem:[#allocation4 + $0x30] sm:$0xff] %vm338, %v434
        %442 = vst.msk [vmem:[#allocation4 + $0x38] sm:$0xff] %vm338, %v435
        %443 = vst.msk [vmem:[#allocation4 + $0x40] sm:$0xff] %vm338, %v436
        %v444 = vld [vmem:[#allocation4 + $0x8] sm:$0xff]
        %v445 = vld [vmem:[#allocation4 + $0x10] sm:$0xff]
        %v446 = vld [vmem:[#allocation4 + $0x18] sm:$0xff]
        %v447 = vld [vmem:[#allocation4 + $0x20] sm:$0xff]
        %v448 = vld [vmem:[#allocation4 + $0x28] sm:$0xff]
        %v449 = vld [vmem:[#allocation4 + $0x30] sm:$0xff]
        %v450 = vld [vmem:[#allocation4 + $0x38] sm:$0xff]
        %v451 = vld [vmem:[#allocation4 + $0x40] sm:$0xff]
        %v452 = vld [vmem:[#allocation4 + $0x48] sm:$0xff]
        %vm460 = vcmask 1046528
        %v461 = vrot.slane %v445, 1
        %v462 = vrot.slane %v446, 1
        %v463 = vsel %vm460, %v461, %v462
        %v464 = vrot.slane %v447, 1
        %v465 = vsel %vm460, %v462, %v464
        %v466 = vrot.slane %v448, 1
        %v467 = vsel %vm460, %v464, %v466
        %v468 = vrot.slane %v449, 1
        %v469 = vsel %vm460, %v466, %v468
        %v470 = vrot.slane %v450, 1
        %v471 = vsel %vm460, %v468, %v470
        %v472 = vrot.slane %v451, 1
        %v473 = vsel %vm460, %v470, %v472
        %474 = vrot.lane.b32.xlu0 %v461, 32
        %v475 = vpop.permute.xlu0 %474
        %476 = vrot.lane.b32.xlu0 %v463, 32
        %v477 = vpop.permute.xlu0 %476
        %478 = vrot.lane.b32.xlu0 %v465, 32
        %v479 = vpop.permute.xlu0 %478
        %480 = vrot.lane.b32.xlu0 %v467, 32
        %v481 = vpop.permute.xlu0 %480
        %482 = vrot.lane.b32.xlu0 %v469, 32
        %v483 = vpop.permute.xlu0 %482
        %484 = vrot.lane.b32.xlu0 %v471, 32
        %v485 = vpop.permute.xlu0 %484
        %486 = vrot.lane.b32.xlu0 %v473, 32
        %v487 = vpop.permute.xlu0 %486
        %488 = vrot.lane.b32.xlu0 %v472, 32
        %v489 = vpop.permute.xlu0 %488
        %vm499 = vcmask 1045504
        %v500 = vrot.slane %v445, 2
        %v501 = vrot.slane %v446, 2
        %v502 = vsel %vm499, %v500, %v501
        %v503 = vrot.slane %v447, 2
        %v504 = vsel %vm499, %v501, %v503
        %v505 = vrot.slane %v448, 2
        %v506 = vsel %vm499, %v503, %v505
        %v507 = vrot.slane %v449, 2
        %v508 = vsel %vm499, %v505, %v507
        %v509 = vrot.slane %v450, 2
        %v510 = vsel %vm499, %v507, %v509
        %v511 = vrot.slane %v451, 2
        %v512 = vsel %vm499, %v509, %v511
        %v513 = vrot.slane %v452, 2
        %v514 = vsel %vm499, %v511, %v513
        %515 = vrot.lane.b32.xlu0 %v500, 64
        %v516 = vpop.permute.xlu0 %515
        %517 = vrot.lane.b32.xlu0 %v502, 64
        %v518 = vpop.permute.xlu0 %517
        %519 = vrot.lane.b32.xlu0 %v504, 64
        %v520 = vpop.permute.xlu0 %519
        %521 = vrot.lane.b32.xlu0 %v506, 64
        %v522 = vpop.permute.xlu0 %521
        %523 = vrot.lane.b32.xlu0 %v508, 64
        %v524 = vpop.permute.xlu0 %523
        %525 = vrot.lane.b32.xlu0 %v510, 64
        %v526 = vpop.permute.xlu0 %525
        %527 = vrot.lane.b32.xlu0 %v512, 64
        %v528 = vpop.permute.xlu0 %527
        %529 = vrot.lane.b32.xlu0 %v514, 64
        %v530 = vpop.permute.xlu0 %529
        %v539 = vsel %vm338, %v444, %v475
        %v540 = vsel %vm338, %v445, %v477
        %v541 = vsel %vm338, %v446, %v479
        %v542 = vsel %vm338, %v447, %v481
        %v543 = vsel %vm338, %v448, %v483
        %v544 = vsel %vm338, %v449, %v485
        %v545 = vsel %vm338, %v450, %v487
        %v546 = vsel %vm338, %v451, %v489
        %vm547 = vcmask 523264
        %v548 = vsel %vm547, %v539, %v516
        %v549 = vsel %vm547, %v540, %v518
        %v550 = vsel %vm547, %v541, %v520
        %v551 = vsel %vm547, %v542, %v522
        %v552 = vsel %vm547, %v543, %v524
        %v553 = vsel %vm547, %v544, %v526
        %v554 = vsel %vm547, %v545, %v528
        %v555 = vsel %vm547, %v546, %v530
        %v556 = vpack.c.bf16 %v549, %v548
        %v557 = vpack.c.bf16 %v551, %v550
        %v558 = vpack.c.bf16 %v553, %v552
        %v559 = vpack.c.bf16 %v555, %v554
        %v560 = vld [vmem:[%s1] sm:$0xf]
        %v561 = vld [vmem:[%s1 + $0x4] sm:$0xf]
        %v562 = vld [vmem:[%s1 + $0x8] sm:$0xf]
        %v563 = vld [vmem:[%s1 + $0xc] sm:$0xf]
        %v564 = vld [vmem:[%s1 + $0x10] sm:$0xf]
        %v565 = vld [vmem:[%s1 + $0x14] sm:$0xf]
        %v566 = vld [vmem:[%s1 + $0x18] sm:$0xf]
        %v567 = vld [vmem:[%s1 + $0x1c] sm:$0xf]
        %v568 = vld [vmem:[%s1 + $0x20] sm:$0xf]
        %v569 = vld [vmem:[%s1 + $0x24] sm:$0xf]
        %v570 = vld [vmem:[%s1 + $0x28] sm:$0xf]
        %v571 = vld [vmem:[%s1 + $0x2c] sm:$0xf]
        %vm572 = vsmask.f32 4352
        %v574 = vshrl.u32 %v556, 16
        %v576 = vrot.slane %v574, 3
        %v577 = vshll.u32 %v556, 16
        %v579 = vrot.slane %v577, 4
        %v580 = vor.u32 %v576, %v579
        %v582 = vshrl.u32 %v557, 16
        %v584 = vrot.slane %v582, 3
        %v585 = vshll.u32 %v557, 16
        %v587 = vrot.slane %v585, 4
        %v588 = vor.u32 %v584, %v587
        %v589 = vsel %vm572, %v580, %v588
        %v591 = vshrl.u32 %v558, 16
        %v593 = vrot.slane %v591, 3
        %v594 = vshll.u32 %v558, 16
        %v596 = vrot.slane %v594, 4
        %v597 = vor.u32 %v593, %v596
        %v598 = vsel %vm572, %v588, %v597
        %v600 = vshrl.u32 %v559, 16
        %v602 = vrot.slane %v600, 3
        %v603 = vshll.u32 %v559, 16
        %v605 = vrot.slane %v603, 4
        %v606 = vor.u32 %v602, %v605
        %v607 = vsel %vm572, %v597, %v606
        %v620 = vunpack.c.l.b16 %v560
        %v621 = vunpack.c.l.b16 %v561
        %v622 = vunpack.c.l.b16 %v562
        %v623 = vunpack.c.l.b16 %v563
        %v624 = vunpack.c.l.b16 %v564
        %v625 = vunpack.c.l.b16 %v565
        %v626 = vunpack.c.l.b16 %v566
        %v627 = vunpack.c.l.b16 %v567
        %v628 = vunpack.c.l.b16 %v568
        %v629 = vunpack.c.l.b16 %v569
        %v630 = vunpack.c.l.b16 %v570
        %v631 = vunpack.c.l.b16 %v571
        %v632 = vpack.c.b16 %v621, %v620
        %v633 = vpack.c.b16 %v623, %v622
        %v634 = vpack.c.b16 %v625, %v624
        %v635 = vpack.c.b16 %v627, %v626
        %v636 = vpack.c.b16 %v629, %v628
        %v637 = vpack.c.b16 %v631, %v630
        %vm644 = vcmask 785408
        %v646 = vsel %vm644, %v589, 0
        %v649 = vsel %vm644, %v598, 0
        %v652 = vsel %vm644, %v607, 0
        %v655 = vsel %vm644, %v606, 0
        %657 = vmatpush.bf16.msra.mxu0 0
        %658 = vmatpush.bf16.msra.mxu0 0
        %659 = vmatpush.bf16.msra.mxu0 %v637
        %660 = vmatpush.bf16.msra.mxu0 %v636
        %661 = vmatpush.bf16.msra.mxu0 %v635
        %662 = vmatpush.bf16.msra.mxu0 %v634
        %663 = vmatpush.bf16.msra.mxu0 %v633
        %664 = vmatpush.bf16.msra.mxu0 %v632
        %665 = vmatmul.bf16.gmra.mxu0 %v646
        %v666 = vpop.f32.mrf.mxu0
        %v667 = vadd.f32 0.0, %v666
        %v668 = vpop.f32.mrf.mxu0
        %v669 = vadd.f32 0.0, %v668
        %670 = vmatmul.bf16.gmra.mxu0 %v649
        %v671 = vpop.f32.mrf.mxu0
        %v672 = vadd.f32 0.0, %v671
        %v673 = vpop.f32.mrf.mxu0
        %v674 = vadd.f32 0.0, %v673
        %675 = vmatmul.bf16.gmra.mxu0 %v652
        %v676 = vpop.f32.mrf.mxu0
        %v677 = vadd.f32 0.0, %v676
        %v678 = vpop.f32.mrf.mxu0
        %v679 = vadd.f32 0.0, %v678
        %680 = vmatmul.bf16.gmra.mxu0 %v655
        %v681 = vpop.f32.mrf.mxu0
        %v682 = vadd.f32 0.0, %v681
        %v683 = vpop.f32.mrf.mxu0
        %684 = vdwg.mxu0
        %v685 = vld [vmem:[#allocation3] sm:$0xff]
        %v686 = vld [vmem:[#allocation3 + $0x8] sm:$0xff]
        %v687 = vld [vmem:[#allocation3 + $0x10] sm:$0xff]
        %v688 = vld [vmem:[#allocation3 + $0x18] sm:$0xff]
        %v689 = vld [vmem:[#allocation3 + $0x20] sm:$0xff]
        %v690 = vld [vmem:[#allocation3 + $0x28] sm:$0xff]
        %v691 = vld [vmem:[#allocation3 + $0x30] sm:$0xff]
        %v692 = vadd.f32 %v685, %v667
        %v693 = vadd.f32 %v686, %v669
        %v694 = vadd.f32 %v687, %v672
        %v695 = vadd.f32 %v688, %v674
        %v696 = vadd.f32 %v689, %v677
        %v697 = vadd.f32 %v690, %v679
        %v698 = vadd.f32 %v691, %v682
        %v699 = vld [vmem:[%s2] sm:$0x1]
        %v701 = vperm.slane %v699, 0
        %v703 = vadd.f32 %v692, %v701
        %v704 = vadd.f32 %v693, %v701
        %v705 = vadd.f32 %v694, %v701
        %v706 = vadd.f32 %v695, %v701
        %v707 = vadd.f32 %v696, %v701
        %v708 = vadd.f32 %v697, %v701
        %v709 = vadd.f32 %v698, %v701
        %710 = vst.msk [vmem:[#allocation3] sm:$0xff] %vm338, %v703
        %711 = vst.msk [vmem:[#allocation3 + $0x8] sm:$0xff] %vm338, %v704
        %712 = vst.msk [vmem:[#allocation3 + $0x10] sm:$0xff] %vm338, %v705
        %713 = vst.msk [vmem:[#allocation3 + $0x18] sm:$0xff] %vm338, %v706
        %714 = vst.msk [vmem:[#allocation3 + $0x20] sm:$0xff] %vm338, %v707
        %715 = vst.msk [vmem:[#allocation3 + $0x28] sm:$0xff] %vm338, %v708
        %716 = vst.msk [vmem:[#allocation3 + $0x30] sm:$0xff] %vm338, %v709
        %v717 = vld [vmem:[#allocation3] sm:$0xff]
        %v718 = vld [vmem:[#allocation3 + $0x8] sm:$0xff]
        %v719 = vld [vmem:[#allocation3 + $0x10] sm:$0xff]
        %v720 = vld [vmem:[#allocation3 + $0x18] sm:$0xff]
        %v721 = vld [vmem:[#allocation3 + $0x20] sm:$0xff]
        %v722 = vld [vmem:[#allocation3 + $0x28] sm:$0xff]
        %v723 = vld [vmem:[#allocation3 + $0x30] sm:$0xff]
        %vm724 = vcmp.gt.f32.partialorder %v717, 0.0
        %vm725 = vcmp.gt.f32.partialorder %v718, 0.0
        %vm726 = vcmp.gt.f32.partialorder %v719, 0.0
        %vm727 = vcmp.gt.f32.partialorder %v720, 0.0
        %vm728 = vcmp.gt.f32.partialorder %v721, 0.0
        %vm729 = vcmp.gt.f32.partialorder %v722, 0.0
        %vm730 = vcmp.gt.f32.partialorder %v723, 0.0
        %v731 = vmul.f32 %v717, 0.1
        %v732 = vmul.f32 %v718, 0.1
        %v733 = vmul.f32 %v719, 0.1
        %v734 = vmul.f32 %v720, 0.1
        %v735 = vmul.f32 %v721, 0.1
        %v736 = vmul.f32 %v722, 0.1
        %v737 = vmul.f32 %v723, 0.1
        %v738 = vsel %vm724, %v717, %v731
        %v739 = vsel %vm725, %v718, %v732
        %v740 = vsel %vm726, %v719, %v733
        %v741 = vsel %vm727, %v720, %v734
        %v742 = vsel %vm728, %v721, %v735
        %v743 = vsel %vm729, %v722, %v736
        %v744 = vsel %vm730, %v723, %v737
        %v745 = vsel %vm381, %v738, 0.0
        %v746 = vsel %vm382, %v739, 0.0
        %v747 = vsel %vm383, %v740, 0.0
        %v748 = vsel %vm384, %v741, 0.0
        %v749 = vsel %vm385, %v742, 0.0
        %v750 = vsel %vm386, %v743, 0.0
        %v751 = vsel %vm387, %v744, 0.0
        %752 = vst.msk [vmem:[#allocation4 + $0x10] sm:$0xff] %vm338, %v745
        %753 = vst.msk [vmem:[#allocation4 + $0x18] sm:$0xff] %vm338, %v746
        %754 = vst.msk [vmem:[#allocation4 + $0x20] sm:$0xff] %vm338, %v747
        %755 = vst.msk [vmem:[#allocation4 + $0x28] sm:$0xff] %vm338, %v748
        %756 = vst.msk [vmem:[#allocation4 + $0x30] sm:$0xff] %vm338, %v749
        %757 = vst.msk [vmem:[#allocation4 + $0x38] sm:$0xff] %vm338, %v750
        %758 = vst.msk [vmem:[#allocation4 + $0x40] sm:$0xff] %vm338, %v751
        %v759 = vld [vmem:[#allocation4 + $0x8] sm:$0xff]
        %v760 = vld [vmem:[#allocation4 + $0x10] sm:$0xff]
        %v761 = vld [vmem:[#allocation4 + $0x18] sm:$0xff]
        %v762 = vld [vmem:[#allocation4 + $0x20] sm:$0xff]
        %v763 = vld [vmem:[#allocation4 + $0x28] sm:$0xff]
        %v764 = vld [vmem:[#allocation4 + $0x30] sm:$0xff]
        %v765 = vld [vmem:[#allocation4 + $0x38] sm:$0xff]
        %v766 = vld [vmem:[#allocation4 + $0x40] sm:$0xff]
        %v767 = vld [vmem:[#allocation4 + $0x48] sm:$0xff]
        %vm775 = vcmask 1044480
        %v776 = vrot.slane %v760, 3
        %v777 = vrot.slane %v761, 3
        %v778 = vsel %vm775, %v776, %v777
        %v779 = vrot.slane %v762, 3
        %v780 = vsel %vm775, %v777, %v779
        %v781 = vrot.slane %v763, 3
        %v782 = vsel %vm775, %v779, %v781
        %v783 = vrot.slane %v764, 3
        %v784 = vsel %vm775, %v781, %v783
        %v785 = vrot.slane %v765, 3
        %v786 = vsel %vm775, %v783, %v785
        %v787 = vrot.slane %v766, 3
        %v788 = vsel %vm775, %v785, %v787
        %789 = vrot.lane.b32.xlu0 %v776, 32
        %v790 = vpop.permute.xlu0 %789
        %791 = vrot.lane.b32.xlu0 %v778, 32
        %v792 = vpop.permute.xlu0 %791
        %793 = vrot.lane.b32.xlu0 %v780, 32
        %v794 = vpop.permute.xlu0 %793
        %795 = vrot.lane.b32.xlu0 %v782, 32
        %v796 = vpop.permute.xlu0 %795
        %797 = vrot.lane.b32.xlu0 %v784, 32
        %v798 = vpop.permute.xlu0 %797
        %799 = vrot.lane.b32.xlu0 %v786, 32
        %v800 = vpop.permute.xlu0 %799
        %801 = vrot.lane.b32.xlu0 %v788, 32
        %v802 = vpop.permute.xlu0 %801
        %803 = vrot.lane.b32.xlu0 %v787, 32
        %v804 = vpop.permute.xlu0 %803
        %vm814 = vcmask 1041408
        %v815 = vrot.slane %v760, 6
        %v816 = vrot.slane %v761, 6
        %v817 = vsel %vm814, %v815, %v816
        %v818 = vrot.slane %v762, 6
        %v819 = vsel %vm814, %v816, %v818
        %v820 = vrot.slane %v763, 6
        %v821 = vsel %vm814, %v818, %v820
        %v822 = vrot.slane %v764, 6
        %v823 = vsel %vm814, %v820, %v822
        %v824 = vrot.slane %v765, 6
        %v825 = vsel %vm814, %v822, %v824
        %v826 = vrot.slane %v766, 6
        %v827 = vsel %vm814, %v824, %v826
        %v828 = vrot.slane %v767, 6
        %v829 = vsel %vm814, %v826, %v828
        %830 = vrot.lane.b32.xlu0 %v815, 64
        %v831 = vpop.permute.xlu0 %830
        %832 = vrot.lane.b32.xlu0 %v817, 64
        %v833 = vpop.permute.xlu0 %832
        %834 = vrot.lane.b32.xlu0 %v819, 64
        %v835 = vpop.permute.xlu0 %834
        %836 = vrot.lane.b32.xlu0 %v821, 64
        %v837 = vpop.permute.xlu0 %836
        %838 = vrot.lane.b32.xlu0 %v823, 64
        %v839 = vpop.permute.xlu0 %838
        %840 = vrot.lane.b32.xlu0 %v825, 64
        %v841 = vpop.permute.xlu0 %840
        %842 = vrot.lane.b32.xlu0 %v827, 64
        %v843 = vpop.permute.xlu0 %842
        %844 = vrot.lane.b32.xlu0 %v829, 64
        %v845 = vpop.permute.xlu0 %844
        %v854 = vsel %vm338, %v759, %v790
        %v855 = vsel %vm338, %v760, %v792
        %v856 = vsel %vm338, %v761, %v794
        %v857 = vsel %vm338, %v762, %v796
        %v858 = vsel %vm338, %v763, %v798
        %v859 = vsel %vm338, %v764, %v800
        %v860 = vsel %vm338, %v765, %v802
        %v861 = vsel %vm338, %v766, %v804
        %v862 = vsel %vm547, %v854, %v831
        %v863 = vsel %vm547, %v855, %v833
        %v864 = vsel %vm547, %v856, %v835
        %v865 = vsel %vm547, %v857, %v837
        %v866 = vsel %vm547, %v858, %v839
        %v867 = vsel %vm547, %v859, %v841
        %v868 = vsel %vm547, %v860, %v843
        %v869 = vsel %vm547, %v861, %v845
        %v870 = vpack.c.bf16 %v863, %v862
        %v871 = vpack.c.bf16 %v865, %v864
        %v872 = vpack.c.bf16 %v867, %v866
        %v873 = vpack.c.bf16 %v869, %v868
        %v874 = vld [vmem:[%s3] sm:$0xf]
        %v875 = vld [vmem:[%s3 + $0x4] sm:$0xf]
        %v876 = vld [vmem:[%s3 + $0x8] sm:$0xf]
        %v877 = vld [vmem:[%s3 + $0xc] sm:$0xf]
        %v878 = vld [vmem:[%s3 + $0x10] sm:$0xf]
        %v879 = vld [vmem:[%s3 + $0x14] sm:$0xf]
        %v880 = vld [vmem:[%s3 + $0x18] sm:$0xf]
        %v881 = vld [vmem:[%s3 + $0x1c] sm:$0xf]
        %v882 = vld [vmem:[%s3 + $0x20] sm:$0xf]
        %v883 = vld [vmem:[%s3 + $0x24] sm:$0xf]
        %v884 = vld [vmem:[%s3 + $0x28] sm:$0xf]
        %v885 = vld [vmem:[%s3 + $0x2c] sm:$0xf]
        %vm886 = vsmask.f32 5376
        %v888 = vshrl.u32 %v870, 16
        %v890 = vrot.slane %v888, 2
        %v891 = vshll.u32 %v870, 16
        %v893 = vrot.slane %v891, 3
        %v894 = vor.u32 %v890, %v893
        %v896 = vshrl.u32 %v871, 16
        %v898 = vrot.slane %v896, 2
        %v899 = vshll.u32 %v871, 16
        %v901 = vrot.slane %v899, 3
        %v902 = vor.u32 %v898, %v901
        %v903 = vsel %vm886, %v894, %v902
        %v905 = vshrl.u32 %v872, 16
        %v907 = vrot.slane %v905, 2
        %v908 = vshll.u32 %v872, 16
        %v910 = vrot.slane %v908, 3
        %v911 = vor.u32 %v907, %v910
        %v912 = vsel %vm886, %v902, %v911
        %v914 = vshrl.u32 %v873, 16
        %v916 = vrot.slane %v914, 2
        %v917 = vshll.u32 %v873, 16
        %v919 = vrot.slane %v917, 3
        %v920 = vor.u32 %v916, %v919
        %v921 = vsel %vm886, %v911, %v920
        %v934 = vunpack.c.l.b16 %v874
        %v935 = vunpack.c.l.b16 %v875
        %v936 = vunpack.c.l.b16 %v876
        %v937 = vunpack.c.l.b16 %v877
        %v938 = vunpack.c.l.b16 %v878
        %v939 = vunpack.c.l.b16 %v879
        %v940 = vunpack.c.l.b16 %v880
        %v941 = vunpack.c.l.b16 %v881
        %v942 = vunpack.c.l.b16 %v882
        %v943 = vunpack.c.l.b16 %v883
        %v944 = vunpack.c.l.b16 %v884
        %v945 = vunpack.c.l.b16 %v885
        %v946 = vpack.c.b16 %v935, %v934
        %v947 = vpack.c.b16 %v937, %v936
        %v948 = vpack.c.b16 %v939, %v938
        %v949 = vpack.c.b16 %v941, %v940
        %v950 = vpack.c.b16 %v943, %v942
        %v951 = vpack.c.b16 %v945, %v944
        %v959 = vsel %vm644, %v903, 0
        %v962 = vsel %vm644, %v912, 0
        %v965 = vsel %vm644, %v921, 0
        %v968 = vsel %vm644, %v920, 0
        %970 = vmatpush.bf16.msra.mxu0 0
        %971 = vmatpush.bf16.msra.mxu0 0
        %972 = vmatpush.bf16.msra.mxu0 %v951
        %973 = vmatpush.bf16.msra.mxu0 %v950
        %974 = vmatpush.bf16.msra.mxu0 %v949
        %975 = vmatpush.bf16.msra.mxu0 %v948
        %976 = vmatpush.bf16.msra.mxu0 %v947
        %977 = vmatpush.bf16.msra.mxu0 %v946
        %978 = vmatmul.bf16.gmra.mxu0 %v959
        %v979 = vpop.f32.mrf.mxu0
        %v980 = vadd.f32 0.0, %v979
        %v981 = vpop.f32.mrf.mxu0
        %v982 = vadd.f32 0.0, %v981
        %983 = vmatmul.bf16.gmra.mxu0 %v962
        %v984 = vpop.f32.mrf.mxu0
        %v985 = vadd.f32 0.0, %v984
        %v986 = vpop.f32.mrf.mxu0
        %v987 = vadd.f32 0.0, %v986
        %988 = vmatmul.bf16.gmra.mxu0 %v965
        %v989 = vpop.f32.mrf.mxu0
        %v990 = vadd.f32 0.0, %v989
        %v991 = vpop.f32.mrf.mxu0
        %v992 = vadd.f32 0.0, %v991
        %993 = vmatmul.bf16.gmra.mxu0 %v968
        %v994 = vpop.f32.mrf.mxu0
        %v995 = vadd.f32 0.0, %v994
        %v996 = vpop.f32.mrf.mxu0
        %997 = vdwg.mxu0
        %v998 = vld [vmem:[#allocation3] sm:$0xff]
        %v999 = vld [vmem:[#allocation3 + $0x8] sm:$0xff]
        %v1000 = vld [vmem:[#allocation3 + $0x10] sm:$0xff]
        %v1001 = vld [vmem:[#allocation3 + $0x18] sm:$0xff]
        %v1002 = vld [vmem:[#allocation3 + $0x20] sm:$0xff]
        %v1003 = vld [vmem:[#allocation3 + $0x28] sm:$0xff]
        %v1004 = vld [vmem:[#allocation3 + $0x30] sm:$0xff]
        %v1005 = vadd.f32 %v998, %v980
        %v1006 = vadd.f32 %v999, %v982
        %v1007 = vadd.f32 %v1000, %v985
        %v1008 = vadd.f32 %v1001, %v987
        %v1009 = vadd.f32 %v1002, %v990
        %v1010 = vadd.f32 %v1003, %v992
        %v1011 = vadd.f32 %v1004, %v995
        %v1012 = vld [vmem:[%s4] sm:$0x1]
        %v1014 = vperm.slane %v1012, 0
        %v1016 = vadd.f32 %v1005, %v1014
        %v1017 = vadd.f32 %v1006, %v1014
        %v1018 = vadd.f32 %v1007, %v1014
        %v1019 = vadd.f32 %v1008, %v1014
        %v1020 = vadd.f32 %v1009, %v1014
        %v1021 = vadd.f32 %v1010, %v1014
        %v1022 = vadd.f32 %v1011, %v1014
        %1023 = vst.msk [vmem:[#allocation3] sm:$0xff] %vm338, %v1016
        %1024 = vst.msk [vmem:[#allocation3 + $0x8] sm:$0xff] %vm338, %v1017
        %1025 = vst.msk [vmem:[#allocation3 + $0x10] sm:$0xff] %vm338, %v1018
        %1026 = vst.msk [vmem:[#allocation3 + $0x18] sm:$0xff] %vm338, %v1019
        %1027 = vst.msk [vmem:[#allocation3 + $0x20] sm:$0xff] %vm338, %v1020
        %1028 = vst.msk [vmem:[#allocation3 + $0x28] sm:$0xff] %vm338, %v1021
        %1029 = vst.msk [vmem:[#allocation3 + $0x30] sm:$0xff] %vm338, %v1022
        %v1030 = vld [vmem:[#allocation3] sm:$0xff]
        %v1031 = vld [vmem:[#allocation3 + $0x8] sm:$0xff]
        %v1032 = vld [vmem:[#allocation3 + $0x10] sm:$0xff]
        %v1033 = vld [vmem:[#allocation3 + $0x18] sm:$0xff]
        %v1034 = vld [vmem:[#allocation3 + $0x20] sm:$0xff]
        %v1035 = vld [vmem:[#allocation3 + $0x28] sm:$0xff]
        %v1036 = vld [vmem:[#allocation3 + $0x30] sm:$0xff]
        %1037 = vst.msk [vmem:[#allocation2] sm:$0xff] %vm338, %v1030
        %1038 = vst.msk [vmem:[#allocation2 + $0x8] sm:$0xff] %vm338, %v1031
        %1039 = vst.msk [vmem:[#allocation2 + $0x10] sm:$0xff] %vm338, %v1032
        %1040 = vst.msk [vmem:[#allocation2 + $0x18] sm:$0xff] %vm338, %v1033
        %1041 = vst.msk [vmem:[#allocation2 + $0x20] sm:$0xff] %vm338, %v1034
        %1042 = vst.msk [vmem:[#allocation2 + $0x28] sm:$0xff] %vm338, %v1035
        %1043 = vst.msk [vmem:[#allocation2 + $0x30] sm:$0xff] %vm338, %v1036
        %v1044 = vld [vmem:[#allocation2] sm:$0xff]
        %v1045 = vld [vmem:[#allocation2 + $0x8] sm:$0xff]
        %v1046 = vld [vmem:[#allocation2 + $0x10] sm:$0xff]
        %v1047 = vld [vmem:[#allocation2 + $0x18] sm:$0xff]
        %v1048 = vld [vmem:[#allocation2 + $0x20] sm:$0xff]
        %v1049 = vld [vmem:[#allocation2 + $0x28] sm:$0xff]
        %v1050 = vld [vmem:[#allocation2 + $0x30] sm:$0xff]
        %1051 = vst.msk [vmem:[#allocation3] sm:$0xff] %vm338, %v1044
        %1052 = vst.msk [vmem:[#allocation3 + $0x8] sm:$0xff] %vm338, %v1045
        %1053 = vst.msk [vmem:[#allocation3 + $0x10] sm:$0xff] %vm338, %v1046
        %1054 = vst.msk [vmem:[#allocation3 + $0x18] sm:$0xff] %vm338, %v1047
        %1055 = vst.msk [vmem:[#allocation3 + $0x20] sm:$0xff] %vm338, %v1048
        %1056 = vst.msk [vmem:[#allocation3 + $0x28] sm:$0xff] %vm338, %v1049
        %1057 = vst.msk [vmem:[#allocation3 + $0x30] sm:$0xff] %vm338, %v1050
        %v1058 = vld [vmem:[#allocation3] sm:$0xff]
        %v1059 = vld [vmem:[#allocation3 + $0x8] sm:$0xff]
        %v1060 = vld [vmem:[#allocation3 + $0x10] sm:$0xff]
        %v1061 = vld [vmem:[#allocation3 + $0x18] sm:$0xff]
        %v1062 = vld [vmem:[#allocation3 + $0x20] sm:$0xff]
        %v1063 = vld [vmem:[#allocation3 + $0x28] sm:$0xff]
        %v1064 = vld [vmem:[#allocation3 + $0x30] sm:$0xff]
        %vm1065 = vcmp.gt.f32.partialorder %v1058, 0.0
        %vm1066 = vcmp.gt.f32.partialorder %v1059, 0.0
        %vm1067 = vcmp.gt.f32.partialorder %v1060, 0.0
        %vm1068 = vcmp.gt.f32.partialorder %v1061, 0.0
        %vm1069 = vcmp.gt.f32.partialorder %v1062, 0.0
        %vm1070 = vcmp.gt.f32.partialorder %v1063, 0.0
        %vm1071 = vcmp.gt.f32.partialorder %v1064, 0.0
        %v1072 = vmul.f32 %v1058, 0.1
        %v1073 = vmul.f32 %v1059, 0.1
        %v1074 = vmul.f32 %v1060, 0.1
        %v1075 = vmul.f32 %v1061, 0.1
        %v1076 = vmul.f32 %v1062, 0.1
        %v1077 = vmul.f32 %v1063, 0.1
        %v1078 = vmul.f32 %v1064, 0.1
        %v1079 = vsel %vm1065, %v1058, %v1072
        %v1080 = vsel %vm1066, %v1059, %v1073
        %v1081 = vsel %vm1067, %v1060, %v1074
        %v1082 = vsel %vm1068, %v1061, %v1075
        %v1083 = vsel %vm1069, %v1062, %v1076
        %v1084 = vsel %vm1070, %v1063, %v1077
        %v1085 = vsel %vm1071, %v1064, %v1078
        %v1086 = vsel %vm381, %v1079, 0.0
        %v1087 = vsel %vm382, %v1080, 0.0
        %v1088 = vsel %vm383, %v1081, 0.0
        %v1089 = vsel %vm384, %v1082, 0.0
        %v1090 = vsel %vm385, %v1083, 0.0
        %v1091 = vsel %vm386, %v1084, 0.0
        %v1092 = vsel %vm387, %v1085, 0.0
        %1093 = vst.msk [vmem:[#allocation4 + $0x10] sm:$0xff] %vm338, %v1086
        %1094 = vst.msk [vmem:[#allocation4 + $0x18] sm:$0xff] %vm338, %v1087
        %1095 = vst.msk [vmem:[#allocation4 + $0x20] sm:$0xff] %vm338, %v1088
        %1096 = vst.msk [vmem:[#allocation4 + $0x28] sm:$0xff] %vm338, %v1089
        %1097 = vst.msk [vmem:[#allocation4 + $0x30] sm:$0xff] %vm338, %v1090
        %1098 = vst.msk [vmem:[#allocation4 + $0x38] sm:$0xff] %vm338, %v1091
        %1099 = vst.msk [vmem:[#allocation4 + $0x40] sm:$0xff] %vm338, %v1092
        %v1100 = vld [vmem:[#allocation4 + $0x8] sm:$0xff]
        %v1101 = vld [vmem:[#allocation4 + $0x10] sm:$0xff]
        %v1102 = vld [vmem:[#allocation4 + $0x18] sm:$0xff]
        %v1103 = vld [vmem:[#allocation4 + $0x20] sm:$0xff]
        %v1104 = vld [vmem:[#allocation4 + $0x28] sm:$0xff]
        %v1105 = vld [vmem:[#allocation4 + $0x30] sm:$0xff]
        %v1106 = vld [vmem:[#allocation4 + $0x38] sm:$0xff]
        %v1107 = vld [vmem:[#allocation4 + $0x40] sm:$0xff]
        %v1108 = vld [vmem:[#allocation4 + $0x48] sm:$0xff]
        %v1117 = vrot.slane %v1100, 2
        %v1118 = vrot.slane %v1101, 2
        %v1119 = vsel %vm499, %v1117, %v1118
        %v1120 = vrot.slane %v1102, 2
        %v1121 = vsel %vm499, %v1118, %v1120
        %v1122 = vrot.slane %v1103, 2
        %v1123 = vsel %vm499, %v1120, %v1122
        %v1124 = vrot.slane %v1104, 2
        %v1125 = vsel %vm499, %v1122, %v1124
        %v1126 = vrot.slane %v1105, 2
        %v1127 = vsel %vm499, %v1124, %v1126
        %v1128 = vrot.slane %v1106, 2
        %v1129 = vsel %vm499, %v1126, %v1128
        %v1130 = vrot.slane %v1107, 2
        %v1131 = vsel %vm499, %v1128, %v1130
        %1132 = vrot.lane.b32.xlu0 %v1119, 32
        %v1133 = vpop.permute.xlu0 %1132
        %1134 = vrot.lane.b32.xlu0 %v1121, 32
        %v1135 = vpop.permute.xlu0 %1134
        %1136 = vrot.lane.b32.xlu0 %v1123, 32
        %v1137 = vpop.permute.xlu0 %1136
        %1138 = vrot.lane.b32.xlu0 %v1125, 32
        %v1139 = vpop.permute.xlu0 %1138
        %1140 = vrot.lane.b32.xlu0 %v1127, 32
        %v1141 = vpop.permute.xlu0 %1140
        %1142 = vrot.lane.b32.xlu0 %v1129, 32
        %v1143 = vpop.permute.xlu0 %1142
        %1144 = vrot.lane.b32.xlu0 %v1131, 32
        %v1145 = vpop.permute.xlu0 %1144
        %1146 = vrot.lane.b32.xlu0 %v1130, 32
        %v1147 = vpop.permute.xlu0 %1146
        %vm1156 = vcmask 1043456
        %v1157 = vrot.slane %v1101, 4
        %v1158 = vrot.slane %v1102, 4
        %v1159 = vsel %vm1156, %v1157, %v1158
        %v1160 = vrot.slane %v1103, 4
        %v1161 = vsel %vm1156, %v1158, %v1160
        %v1162 = vrot.slane %v1104, 4
        %v1163 = vsel %vm1156, %v1160, %v1162
        %v1164 = vrot.slane %v1105, 4
        %v1165 = vsel %vm1156, %v1162, %v1164
        %v1166 = vrot.slane %v1106, 4
        %v1167 = vsel %vm1156, %v1164, %v1166
        %v1168 = vrot.slane %v1107, 4
        %v1169 = vsel %vm1156, %v1166, %v1168
        %1170 = vrot.lane.b32.xlu0 %v1157, 64
        %v1171 = vpop.permute.xlu0 %1170
        %1172 = vrot.lane.b32.xlu0 %v1159, 64
        %v1173 = vpop.permute.xlu0 %1172
        %1174 = vrot.lane.b32.xlu0 %v1161, 64
        %v1175 = vpop.permute.xlu0 %1174
        %1176 = vrot.lane.b32.xlu0 %v1163, 64
        %v1177 = vpop.permute.xlu0 %1176
        %1178 = vrot.lane.b32.xlu0 %v1165, 64
        %v1179 = vpop.permute.xlu0 %1178
        %1180 = vrot.lane.b32.xlu0 %v1167, 64
        %v1181 = vpop.permute.xlu0 %1180
        %1182 = vrot.lane.b32.xlu0 %v1169, 64
        %v1183 = vpop.permute.xlu0 %1182
        %1184 = vrot.lane.b32.xlu0 %v1168, 64
        %v1185 = vpop.permute.xlu0 %1184
        %v1195 = vrot.slane %v1101, 6
        %v1196 = vrot.slane %v1102, 6
        %v1197 = vsel %vm814, %v1195, %v1196
        %v1198 = vrot.slane %v1103, 6
        %v1199 = vsel %vm814, %v1196, %v1198
        %v1200 = vrot.slane %v1104, 6
        %v1201 = vsel %vm814, %v1198, %v1200
        %v1202 = vrot.slane %v1105, 6
        %v1203 = vsel %vm814, %v1200, %v1202
        %v1204 = vrot.slane %v1106, 6
        %v1205 = vsel %vm814, %v1202, %v1204
        %v1206 = vrot.slane %v1107, 6
        %v1207 = vsel %vm814, %v1204, %v1206
        %v1208 = vrot.slane %v1108, 6
        %v1209 = vsel %vm814, %v1206, %v1208
        %1210 = vrot.lane.b32.xlu0 %v1195, 96
        %v1211 = vpop.permute.xlu0 %1210
        %1212 = vrot.lane.b32.xlu0 %v1197, 96
        %v1213 = vpop.permute.xlu0 %1212
        %1214 = vrot.lane.b32.xlu0 %v1199, 96
        %v1215 = vpop.permute.xlu0 %1214
        %1216 = vrot.lane.b32.xlu0 %v1201, 96
        %v1217 = vpop.permute.xlu0 %1216
        %1218 = vrot.lane.b32.xlu0 %v1203, 96
        %v1219 = vpop.permute.xlu0 %1218
        %1220 = vrot.lane.b32.xlu0 %v1205, 96
        %v1221 = vpop.permute.xlu0 %1220
        %1222 = vrot.lane.b32.xlu0 %v1207, 96
        %v1223 = vpop.permute.xlu0 %1222
        %1224 = vrot.lane.b32.xlu0 %v1209, 96
        %v1225 = vpop.permute.xlu0 %1224
        %v1234 = vsel %vm338, %v1100, %v1133
        %v1235 = vsel %vm338, %v1101, %v1135
        %v1236 = vsel %vm338, %v1102, %v1137
        %v1237 = vsel %vm338, %v1103, %v1139
        %v1238 = vsel %vm338, %v1104, %v1141
        %v1239 = vsel %vm338, %v1105, %v1143
        %v1240 = vsel %vm338, %v1106, %v1145
        %v1241 = vsel %vm338, %v1107, %v1147
        %v1242 = vsel %vm547, %v1234, %v1171
        %v1243 = vsel %vm547, %v1235, %v1173
        %v1244 = vsel %vm547, %v1236, %v1175
        %v1245 = vsel %vm547, %v1237, %v1177
        %v1246 = vsel %vm547, %v1238, %v1179
        %v1247 = vsel %vm547, %v1239, %v1181
        %v1248 = vsel %vm547, %v1240, %v1183
        %v1249 = vsel %vm547, %v1241, %v1185
        %v1250 = vsel %vm644, %v1242, %v1211
        %v1251 = vsel %vm644, %v1243, %v1213
        %v1252 = vsel %vm644, %v1244, %v1215
        %v1253 = vsel %vm644, %v1245, %v1217
        %v1254 = vsel %vm644, %v1246, %v1219
        %v1255 = vsel %vm644, %v1247, %v1221
        %v1256 = vsel %vm644, %v1248, %v1223
        %v1257 = vsel %vm644, %v1249, %v1225
        %v1258 = vpack.c.bf16 %v1251, %v1250
        %v1259 = vpack.c.bf16 %v1102, %v1101
        %v1260 = vpack.c.bf16 %v1253, %v1252
        %v1261 = vpack.c.bf16 %v1104, %v1103
        %v1262 = vpack.c.bf16 %v1255, %v1254
        %v1263 = vpack.c.bf16 %v1106, %v1105
        %v1264 = vpack.c.bf16 %v1257, %v1256
        %v1265 = vpack.c.bf16 %v1108, %v1107
        %v1266 = vld [vmem:[%s5] sm:$0xf]
        %v1267 = vld [vmem:[%s5 + $0x4] sm:$0xf]
        %v1268 = vld [vmem:[%s5 + $0x8] sm:$0xf]
        %v1269 = vld [vmem:[%s5 + $0xc] sm:$0xf]
        %v1270 = vld [vmem:[%s5 + $0x10] sm:$0xf]
        %v1271 = vld [vmem:[%s5 + $0x14] sm:$0xf]
        %v1272 = vld [vmem:[%s5 + $0x18] sm:$0xf]
        %v1273 = vld [vmem:[%s5 + $0x1c] sm:$0xf]
        %v1274 = vld [vmem:[%s5 + $0x20] sm:$0xf]
        %v1275 = vld [vmem:[%s5 + $0x24] sm:$0xf]
        %v1276 = vld [vmem:[%s5 + $0x28] sm:$0xf]
        %v1277 = vld [vmem:[%s5 + $0x2c] sm:$0xf]
        %v1278 = vld [vmem:[%s5 + $0x30] sm:$0xf]
        %v1279 = vld [vmem:[%s5 + $0x34] sm:$0xf]
        %v1280 = vld [vmem:[%s5 + $0x38] sm:$0xf]
        %v1281 = vld [vmem:[%s5 + $0x3c] sm:$0xf]
        %v1282 = vld [vmem:[%s5 + $0x40] sm:$0xf]
        %v1283 = vld [vmem:[%s5 + $0x44] sm:$0xf]
        %v1284 = vld [vmem:[%s5 + $0x48] sm:$0xf]
        %v1285 = vld [vmem:[%s5 + $0x4c] sm:$0xf]
        %vm1294 = vcmask 1045504
        %v1295 = vrot.slane %v1258, 2
        %v1296 = vrot.slane %v1260, 2
        %v1297 = vsel %vm1294, %v1295, %v1296
        %v1298 = vrot.slane %v1259, 2
        %v1299 = vrot.slane %v1261, 2
        %v1300 = vsel %vm1294, %v1298, %v1299
        %v1301 = vrot.slane %v1262, 2
        %v1302 = vsel %vm1294, %v1296, %v1301
        %v1303 = vrot.slane %v1263, 2
        %v1304 = vsel %vm1294, %v1299, %v1303
        %v1305 = vrot.slane %v1264, 2
        %v1306 = vsel %vm1294, %v1301, %v1305
        %v1307 = vrot.slane %v1265, 2
        %v1308 = vsel %vm1294, %v1303, %v1307
        %v1333 = vunpack.c.l.b16 %v1266
        %v1334 = vunpack.c.l.b16 %v1267
        %v1335 = vunpack.c.l.b16 %v1268
        %v1336 = vunpack.c.l.b16 %v1269
        %v1337 = vunpack.c.l.b16 %v1270
        %v1338 = vunpack.c.l.b16 %v1271
        %v1339 = vunpack.c.l.b16 %v1272
        %v1340 = vunpack.c.l.b16 %v1273
        %v1341 = vunpack.c.l.b16 %v1274
        %v1342 = vunpack.c.l.b16 %v1275
        %v1343 = vunpack.c.l.b16 %v1276
        %v1344 = vunpack.c.l.b16 %v1277
        %v1345 = vunpack.c.l.b16 %v1278
        %v1346 = vunpack.c.l.b16 %v1279
        %v1347 = vunpack.c.l.b16 %v1280
        %v1348 = vunpack.c.l.b16 %v1281
        %v1349 = vunpack.c.l.b16 %v1282
        %v1350 = vunpack.c.l.b16 %v1283
        %v1351 = vunpack.c.l.b16 %v1284
        %v1352 = vunpack.c.l.b16 %v1285
        %v1353 = vpack.c.b16 %v1334, %v1333
        %v1354 = vpack.c.b16 %v1336, %v1335
        %v1355 = vpack.c.b16 %v1338, %v1337
        %v1356 = vpack.c.b16 %v1340, %v1339
        %v1357 = vpack.c.b16 %v1342, %v1341
        %v1358 = vpack.c.b16 %v1344, %v1343
        %v1359 = vpack.c.b16 %v1346, %v1345
        %v1360 = vpack.c.b16 %v1348, %v1347
        %v1361 = vpack.c.b16 %v1350, %v1349
        %v1362 = vpack.c.b16 %v1352, %v1351
        %v1374 = vsel %vm338, %v1300, 0
        %v1377 = vsel %vm338, %v1304, 0
        %v1380 = vsel %vm338, %v1308, 0
        %v1383 = vsel %vm338, %v1307, 0
        %1385 = vmatpush.bf16.msra.mxu0 %v1360
        %1386 = vmatpush.bf16.msra.mxu0 %v1359
        %1387 = vmatpush.bf16.msra.mxu0 %v1358
        %1388 = vmatpush.bf16.msra.mxu0 %v1357
        %1389 = vmatpush.bf16.msra.mxu0 %v1356
        %1390 = vmatpush.bf16.msra.mxu0 %v1355
        %1391 = vmatpush.bf16.msra.mxu0 %v1354
        %1392 = vmatpush.bf16.msra.mxu0 %v1353
        %1393 = vmatmul.bf16.gmra.mxu0 %v1297
        %v1394 = vpop.f32.mrf.mxu0
        %v1395 = vadd.f32 0.0, %v1394
        %v1396 = vpop.f32.mrf.mxu0
        %v1397 = vadd.f32 0.0, %v1396
        %1398 = vmatmul.bf16.gmra.mxu0 %v1302
        %v1399 = vpop.f32.mrf.mxu0
        %v1400 = vadd.f32 0.0, %v1399
        %v1401 = vpop.f32.mrf.mxu0
        %v1402 = vadd.f32 0.0, %v1401
        %1403 = vmatmul.bf16.gmra.mxu0 %v1306
        %v1404 = vpop.f32.mrf.mxu0
        %v1405 = vadd.f32 0.0, %v1404
        %v1406 = vpop.f32.mrf.mxu0
        %v1407 = vadd.f32 0.0, %v1406
        %1408 = vmatmul.bf16.gmra.mxu0 %v1305
        %v1409 = vpop.f32.mrf.mxu0
        %v1410 = vadd.f32 0.0, %v1409
        %v1411 = vpop.f32.mrf.mxu0
        %1412 = vdwg.mxu0
        %1413 = vmatpush.bf16.msra.mxu0 0
        %1414 = vmatpush.bf16.msra.mxu0 0
        %1415 = vmatpush.bf16.msra.mxu0 0
        %1416 = vmatpush.bf16.msra.mxu0 0
        %1417 = vmatpush.bf16.msra.mxu0 0
        %1418 = vmatpush.bf16.msra.mxu0 0
        %1419 = vmatpush.bf16.msra.mxu0 %v1362
        %1420 = vmatpush.bf16.msra.mxu0 %v1361
        %1421 = vmatmul.bf16.gmra.mxu0 %v1374
        %v1422 = vpop.f32.mrf.mxu0
        %v1423 = vadd.f32 %v1395, %v1422
        %v1424 = vpop.f32.mrf.mxu0
        %v1425 = vadd.f32 %v1397, %v1424
        %1426 = vmatmul.bf16.gmra.mxu0 %v1377
        %v1427 = vpop.f32.mrf.mxu0
        %v1428 = vadd.f32 %v1400, %v1427
        %v1429 = vpop.f32.mrf.mxu0
        %v1430 = vadd.f32 %v1402, %v1429
        %1431 = vmatmul.bf16.gmra.mxu0 %v1380
        %v1432 = vpop.f32.mrf.mxu0
        %v1433 = vadd.f32 %v1405, %v1432
        %v1434 = vpop.f32.mrf.mxu0
        %v1435 = vadd.f32 %v1407, %v1434
        %1436 = vmatmul.bf16.gmra.mxu0 %v1383
        %v1437 = vpop.f32.mrf.mxu0
        %v1438 = vadd.f32 %v1410, %v1437
        %v1439 = vpop.f32.mrf.mxu0
        %1440 = vdwg.mxu0
        %v1441 = vld [vmem:[#allocation3] sm:$0xff]
        %v1442 = vld [vmem:[#allocation3 + $0x8] sm:$0xff]
        %v1443 = vld [vmem:[#allocation3 + $0x10] sm:$0xff]
        %v1444 = vld [vmem:[#allocation3 + $0x18] sm:$0xff]
        %v1445 = vld [vmem:[#allocation3 + $0x20] sm:$0xff]
        %v1446 = vld [vmem:[#allocation3 + $0x28] sm:$0xff]
        %v1447 = vld [vmem:[#allocation3 + $0x30] sm:$0xff]
        %v1448 = vadd.f32 %v1441, %v1423
        %v1449 = vadd.f32 %v1442, %v1425
        %v1450 = vadd.f32 %v1443, %v1428
        %v1451 = vadd.f32 %v1444, %v1430
        %v1452 = vadd.f32 %v1445, %v1433
        %v1453 = vadd.f32 %v1446, %v1435
        %v1454 = vadd.f32 %v1447, %v1438
        %v1455 = vld [vmem:[%s6] sm:$0x1]
        %v1457 = vperm.slane %v1455, 0
        %v1459 = vadd.f32 %v1448, %v1457
        %v1460 = vadd.f32 %v1449, %v1457
        %v1461 = vadd.f32 %v1450, %v1457
        %v1462 = vadd.f32 %v1451, %v1457
        %v1463 = vadd.f32 %v1452, %v1457
        %v1464 = vadd.f32 %v1453, %v1457
        %v1465 = vadd.f32 %v1454, %v1457
        %1466 = vst.msk [vmem:[#allocation3] sm:$0xff] %vm338, %v1459
        %1467 = vst.msk [vmem:[#allocation3 + $0x8] sm:$0xff] %vm338, %v1460
        %1468 = vst.msk [vmem:[#allocation3 + $0x10] sm:$0xff] %vm338, %v1461
        %1469 = vst.msk [vmem:[#allocation3 + $0x18] sm:$0xff] %vm338, %v1462
        %1470 = vst.msk [vmem:[#allocation3 + $0x20] sm:$0xff] %vm338, %v1463
        %1471 = vst.msk [vmem:[#allocation3 + $0x28] sm:$0xff] %vm338, %v1464
        %1472 = vst.msk [vmem:[#allocation3 + $0x30] sm:$0xff] %vm338, %v1465
        %v1473 = vld [vmem:[#allocation3] sm:$0xff]
        %v1474 = vld [vmem:[#allocation3 + $0x8] sm:$0xff]
        %v1475 = vld [vmem:[#allocation3 + $0x10] sm:$0xff]
        %v1476 = vld [vmem:[#allocation3 + $0x18] sm:$0xff]
        %v1477 = vld [vmem:[#allocation3 + $0x20] sm:$0xff]
        %v1478 = vld [vmem:[#allocation3 + $0x28] sm:$0xff]
        %v1479 = vld [vmem:[#allocation3 + $0x30] sm:$0xff]
        %vm1480 = vcmp.gt.f32.partialorder %v1473, 0.0
        %vm1481 = vcmp.gt.f32.partialorder %v1474, 0.0
        %vm1482 = vcmp.gt.f32.partialorder %v1475, 0.0
        %vm1483 = vcmp.gt.f32.partialorder %v1476, 0.0
        %vm1484 = vcmp.gt.f32.partialorder %v1477, 0.0
        %vm1485 = vcmp.gt.f32.partialorder %v1478, 0.0
        %vm1486 = vcmp.gt.f32.partialorder %v1479, 0.0
        %v1487 = vmul.f32 %v1473, 0.1
        %v1488 = vmul.f32 %v1474, 0.1
        %v1489 = vmul.f32 %v1475, 0.1
        %v1490 = vmul.f32 %v1476, 0.1
        %v1491 = vmul.f32 %v1477, 0.1
        %v1492 = vmul.f32 %v1478, 0.1
        %v1493 = vmul.f32 %v1479, 0.1
        %v1494 = vsel %vm1480, %v1473, %v1487
        %v1495 = vsel %vm1481, %v1474, %v1488
        %v1496 = vsel %vm1482, %v1475, %v1489
        %v1497 = vsel %vm1483, %v1476, %v1490
        %v1498 = vsel %vm1484, %v1477, %v1491
        %v1499 = vsel %vm1485, %v1478, %v1492
        %v1500 = vsel %vm1486, %v1479, %v1493
        %v1501 = vsel %vm381, %v1494, 0.0
        %v1502 = vsel %vm382, %v1495, 0.0
        %v1503 = vsel %vm383, %v1496, 0.0
        %v1504 = vsel %vm384, %v1497, 0.0
        %v1505 = vsel %vm385, %v1498, 0.0
        %v1506 = vsel %vm386, %v1499, 0.0
        %v1507 = vsel %vm387, %v1500, 0.0
        %1508 = vst.msk [vmem:[#allocation4 + $0x10] sm:$0xff] %vm338, %v1501
        %1509 = vst.msk [vmem:[#allocation4 + $0x18] sm:$0xff] %vm338, %v1502
        %1510 = vst.msk [vmem:[#allocation4 + $0x20] sm:$0xff] %vm338, %v1503
        %1511 = vst.msk [vmem:[#allocation4 + $0x28] sm:$0xff] %vm338, %v1504
        %1512 = vst.msk [vmem:[#allocation4 + $0x30] sm:$0xff] %vm338, %v1505
        %1513 = vst.msk [vmem:[#allocation4 + $0x38] sm:$0xff] %vm338, %v1506
        %1514 = vst.msk [vmem:[#allocation4 + $0x40] sm:$0xff] %vm338, %v1507
        %v1515 = vld [vmem:[#allocation4] sm:$0xff]
        %v1516 = vld [vmem:[#allocation4 + $0x8] sm:$0xff]
        %v1517 = vld [vmem:[#allocation4 + $0x10] sm:$0xff]
        %v1518 = vld [vmem:[#allocation4 + $0x18] sm:$0xff]
        %v1519 = vld [vmem:[#allocation4 + $0x20] sm:$0xff]
        %v1520 = vld [vmem:[#allocation4 + $0x28] sm:$0xff]
        %v1521 = vld [vmem:[#allocation4 + $0x30] sm:$0xff]
        %v1522 = vld [vmem:[#allocation4 + $0x38] sm:$0xff]
        %v1523 = vld [vmem:[#allocation4 + $0x40] sm:$0xff]
        %v1524 = vld [vmem:[#allocation4 + $0x48] sm:$0xff]
        %v1525 = vld [vmem:[#allocation4 + $0x50] sm:$0xff]
        %v1534 = vrot.slane %v1516, 6
        %v1535 = vrot.slane %v1517, 6
        %v1536 = vsel %vm814, %v1534, %v1535
        %v1537 = vrot.slane %v1518, 6
        %v1538 = vsel %vm814, %v1535, %v1537
        %v1539 = vrot.slane %v1519, 6
        %v1540 = vsel %vm814, %v1537, %v1539
        %v1541 = vrot.slane %v1520, 6
        %v1542 = vsel %vm814, %v1539, %v1541
        %v1543 = vrot.slane %v1521, 6
        %v1544 = vsel %vm814, %v1541, %v1543
        %v1545 = vrot.slane %v1522, 6
        %v1546 = vsel %vm814, %v1543, %v1545
        %v1547 = vrot.slane %v1523, 6
        %v1548 = vsel %vm814, %v1545, %v1547
        %1549 = vrot.lane.b32.xlu0 %v1534, 32
        %v1550 = vpop.permute.xlu0 %1549
        %1551 = vrot.lane.b32.xlu0 %v1536, 32
        %v1552 = vpop.permute.xlu0 %1551
        %1553 = vrot.lane.b32.xlu0 %v1538, 32
        %v1554 = vpop.permute.xlu0 %1553
        %1555 = vrot.lane.b32.xlu0 %v1540, 32
        %v1556 = vpop.permute.xlu0 %1555
        %1557 = vrot.lane.b32.xlu0 %v1542, 32
        %v1558 = vpop.permute.xlu0 %1557
        %1559 = vrot.lane.b32.xlu0 %v1544, 32
        %v1560 = vpop.permute.xlu0 %1559
        %1561 = vrot.lane.b32.xlu0 %v1546, 32
        %v1562 = vpop.permute.xlu0 %1561
        %1563 = vrot.lane.b32.xlu0 %v1548, 32
        %v1564 = vpop.permute.xlu0 %1563
        %v1573 = vrot.slane %v1517, 4
        %v1574 = vrot.slane %v1518, 4
        %v1575 = vsel %vm1156, %v1573, %v1574
        %v1576 = vrot.slane %v1519, 4
        %v1577 = vsel %vm1156, %v1574, %v1576
        %v1578 = vrot.slane %v1520, 4
        %v1579 = vsel %vm1156, %v1576, %v1578
        %v1580 = vrot.slane %v1521, 4
        %v1581 = vsel %vm1156, %v1578, %v1580
        %v1582 = vrot.slane %v1522, 4
        %v1583 = vsel %vm1156, %v1580, %v1582
        %v1584 = vrot.slane %v1523, 4
        %v1585 = vsel %vm1156, %v1582, %v1584
        %1586 = vrot.lane.b32.xlu0 %v1573, 64
        %v1587 = vpop.permute.xlu0 %1586
        %1588 = vrot.lane.b32.xlu0 %v1575, 64
        %v1589 = vpop.permute.xlu0 %1588
        %1590 = vrot.lane.b32.xlu0 %v1577, 64
        %v1591 = vpop.permute.xlu0 %1590
        %1592 = vrot.lane.b32.xlu0 %v1579, 64
        %v1593 = vpop.permute.xlu0 %1592
        %1594 = vrot.lane.b32.xlu0 %v1581, 64
        %v1595 = vpop.permute.xlu0 %1594
        %1596 = vrot.lane.b32.xlu0 %v1583, 64
        %v1597 = vpop.permute.xlu0 %1596
        %1598 = vrot.lane.b32.xlu0 %v1585, 64
        %v1599 = vpop.permute.xlu0 %1598
        %1600 = vrot.lane.b32.xlu0 %v1584, 64
        %v1601 = vpop.permute.xlu0 %1600
        %v1611 = vrot.slane %v1517, 2
        %v1612 = vrot.slane %v1518, 2
        %v1613 = vsel %vm499, %v1611, %v1612
        %v1614 = vrot.slane %v1519, 2
        %v1615 = vsel %vm499, %v1612, %v1614
        %v1616 = vrot.slane %v1520, 2
        %v1617 = vsel %vm499, %v1614, %v1616
        %v1618 = vrot.slane %v1521, 2
        %v1619 = vsel %vm499, %v1616, %v1618
        %v1620 = vrot.slane %v1522, 2
        %v1621 = vsel %vm499, %v1618, %v1620
        %v1622 = vrot.slane %v1523, 2
        %v1623 = vsel %vm499, %v1620, %v1622
        %v1624 = vrot.slane %v1524, 2
        %v1625 = vsel %vm499, %v1622, %v1624
        %1626 = vrot.lane.b32.xlu0 %v1613, 96
        %v1627 = vpop.permute.xlu0 %1626
        %1628 = vrot.lane.b32.xlu0 %v1615, 96
        %v1629 = vpop.permute.xlu0 %1628
        %1630 = vrot.lane.b32.xlu0 %v1617, 96
        %v1631 = vpop.permute.xlu0 %1630
        %1632 = vrot.lane.b32.xlu0 %v1619, 96
        %v1633 = vpop.permute.xlu0 %1632
        %1634 = vrot.lane.b32.xlu0 %v1621, 96
        %v1635 = vpop.permute.xlu0 %1634
        %1636 = vrot.lane.b32.xlu0 %v1623, 96
        %v1637 = vpop.permute.xlu0 %1636
        %1638 = vrot.lane.b32.xlu0 %v1625, 96
        %v1639 = vpop.permute.xlu0 %1638
        %1640 = vrot.lane.b32.xlu0 %v1624, 96
        %v1641 = vpop.permute.xlu0 %1640
        %v1650 = vsel %vm338, %v1515, %v1550
        %v1651 = vsel %vm338, %v1516, %v1552
        %v1652 = vsel %vm338, %v1517, %v1554
        %v1653 = vsel %vm338, %v1518, %v1556
        %v1654 = vsel %vm338, %v1519, %v1558
        %v1655 = vsel %vm338, %v1520, %v1560
        %v1656 = vsel %vm338, %v1521, %v1562
        %v1657 = vsel %vm338, %v1522, %v1564
        %v1658 = vsel %vm547, %v1650, %v1587
        %v1659 = vsel %vm547, %v1651, %v1589
        %v1660 = vsel %vm547, %v1652, %v1591
        %v1661 = vsel %vm547, %v1653, %v1593
        %v1662 = vsel %vm547, %v1654, %v1595
        %v1663 = vsel %vm547, %v1655, %v1597
        %v1664 = vsel %vm547, %v1656, %v1599
        %v1665 = vsel %vm547, %v1657, %v1601
        %v1666 = vsel %vm644, %v1658, %v1627
        %v1667 = vsel %vm644, %v1659, %v1629
        %v1668 = vsel %vm644, %v1660, %v1631
        %v1669 = vsel %vm644, %v1661, %v1633
        %v1670 = vsel %vm644, %v1662, %v1635
        %v1671 = vsel %vm644, %v1663, %v1637
        %v1672 = vsel %vm644, %v1664, %v1639
        %v1673 = vsel %vm644, %v1665, %v1641
        %v1674 = vpack.c.bf16 %v1667, %v1666
        %v1675 = vpack.c.bf16 %v1519, %v1518
        %v1676 = vpack.c.bf16 %v1669, %v1668
        %v1677 = vpack.c.bf16 %v1521, %v1520
        %v1678 = vpack.c.bf16 %v1671, %v1670
        %v1679 = vpack.c.bf16 %v1523, %v1522
        %v1680 = vpack.c.bf16 %v1673, %v1672
        %v1681 = vpack.c.bf16 %v1525, %v1524
        %v1682 = vld [vmem:[%s7] sm:$0xf]
        %v1683 = vld [vmem:[%s7 + $0x4] sm:$0xf]
        %v1684 = vld [vmem:[%s7 + $0x8] sm:$0xf]
        %v1685 = vld [vmem:[%s7 + $0xc] sm:$0xf]
        %v1686 = vld [vmem:[%s7 + $0x10] sm:$0xf]
        %v1687 = vld [vmem:[%s7 + $0x14] sm:$0xf]
        %v1688 = vld [vmem:[%s7 + $0x18] sm:$0xf]
        %v1689 = vld [vmem:[%s7 + $0x1c] sm:$0xf]
        %v1690 = vld [vmem:[%s7 + $0x20] sm:$0xf]
        %v1691 = vld [vmem:[%s7 + $0x24] sm:$0xf]
        %v1692 = vld [vmem:[%s7 + $0x28] sm:$0xf]
        %v1693 = vld [vmem:[%s7 + $0x2c] sm:$0xf]
        %v1694 = vld [vmem:[%s7 + $0x30] sm:$0xf]
        %v1695 = vld [vmem:[%s7 + $0x34] sm:$0xf]
        %v1696 = vld [vmem:[%s7 + $0x38] sm:$0xf]
        %v1697 = vld [vmem:[%s7 + $0x3c] sm:$0xf]
        %v1698 = vld [vmem:[%s7 + $0x40] sm:$0xf]
        %v1699 = vld [vmem:[%s7 + $0x44] sm:$0xf]
        %v1700 = vld [vmem:[%s7 + $0x48] sm:$0xf]
        %v1701 = vld [vmem:[%s7 + $0x4c] sm:$0xf]
        %v1710 = vrot.slane %v1674, 2
        %v1711 = vrot.slane %v1676, 2
        %v1712 = vsel %vm1294, %v1710, %v1711
        %v1713 = vrot.slane %v1675, 2
        %v1714 = vrot.slane %v1677, 2
        %v1715 = vsel %vm1294, %v1713, %v1714
        %v1716 = vrot.slane %v1678, 2
        %v1717 = vsel %vm1294, %v1711, %v1716
        %v1718 = vrot.slane %v1679, 2
        %v1719 = vsel %vm1294, %v1714, %v1718
        %v1720 = vrot.slane %v1680, 2
        %v1721 = vsel %vm1294, %v1716, %v1720
        %v1722 = vrot.slane %v1681, 2
        %v1723 = vsel %vm1294, %v1718, %v1722
        %v1748 = vunpack.c.l.b16 %v1682
        %v1749 = vunpack.c.l.b16 %v1683
        %v1750 = vunpack.c.l.b16 %v1684
        %v1751 = vunpack.c.l.b16 %v1685
        %v1752 = vunpack.c.l.b16 %v1686
        %v1753 = vunpack.c.l.b16 %v1687
        %v1754 = vunpack.c.l.b16 %v1688
        %v1755 = vunpack.c.l.b16 %v1689
        %v1756 = vunpack.c.l.b16 %v1690
        %v1757 = vunpack.c.l.b16 %v1691
        %v1758 = vunpack.c.l.b16 %v1692
        %v1759 = vunpack.c.l.b16 %v1693
        %v1760 = vunpack.c.l.b16 %v1694
        %v1761 = vunpack.c.l.b16 %v1695
        %v1762 = vunpack.c.l.b16 %v1696
        %v1763 = vunpack.c.l.b16 %v1697
        %v1764 = vunpack.c.l.b16 %v1698
        %v1765 = vunpack.c.l.b16 %v1699
        %v1766 = vunpack.c.l.b16 %v1700
        %v1767 = vunpack.c.l.b16 %v1701
        %v1768 = vpack.c.b16 %v1749, %v1748
        %v1769 = vpack.c.b16 %v1751, %v1750
        %v1770 = vpack.c.b16 %v1753, %v1752
        %v1771 = vpack.c.b16 %v1755, %v1754
        %v1772 = vpack.c.b16 %v1757, %v1756
        %v1773 = vpack.c.b16 %v1759, %v1758
        %v1774 = vpack.c.b16 %v1761, %v1760
        %v1775 = vpack.c.b16 %v1763, %v1762
        %v1776 = vpack.c.b16 %v1765, %v1764
        %v1777 = vpack.c.b16 %v1767, %v1766
        %v1789 = vsel %vm338, %v1715, 0
        %v1792 = vsel %vm338, %v1719, 0
        %v1795 = vsel %vm338, %v1723, 0
        %v1798 = vsel %vm338, %v1722, 0
        %1800 = vmatpush.bf16.msra.mxu0 %v1775
        %1801 = vmatpush.bf16.msra.mxu0 %v1774
        %1802 = vmatpush.bf16.msra.mxu0 %v1773
        %1803 = vmatpush.bf16.msra.mxu0 %v1772
        %1804 = vmatpush.bf16.msra.mxu0 %v1771
        %1805 = vmatpush.bf16.msra.mxu0 %v1770
        %1806 = vmatpush.bf16.msra.mxu0 %v1769
        %1807 = vmatpush.bf16.msra.mxu0 %v1768
        %1808 = vmatmul.bf16.gmra.mxu0 %v1712
        %v1809 = vpop.f32.mrf.mxu0
        %v1810 = vadd.f32 0.0, %v1809
        %v1811 = vpop.f32.mrf.mxu0
        %v1812 = vadd.f32 0.0, %v1811
        %1813 = vmatmul.bf16.gmra.mxu0 %v1717
        %v1814 = vpop.f32.mrf.mxu0
        %v1815 = vadd.f32 0.0, %v1814
        %v1816 = vpop.f32.mrf.mxu0
        %v1817 = vadd.f32 0.0, %v1816
        %1818 = vmatmul.bf16.gmra.mxu0 %v1721
        %v1819 = vpop.f32.mrf.mxu0
        %v1820 = vadd.f32 0.0, %v1819
        %v1821 = vpop.f32.mrf.mxu0
        %v1822 = vadd.f32 0.0, %v1821
        %1823 = vmatmul.bf16.gmra.mxu0 %v1720
        %v1824 = vpop.f32.mrf.mxu0
        %v1825 = vadd.f32 0.0, %v1824
        %v1826 = vpop.f32.mrf.mxu0
        %1827 = vdwg.mxu0
        %1828 = vmatpush.bf16.msra.mxu0 0
        %1829 = vmatpush.bf16.msra.mxu0 0
        %1830 = vmatpush.bf16.msra.mxu0 0
        %1831 = vmatpush.bf16.msra.mxu0 0
        %1832 = vmatpush.bf16.msra.mxu0 0
        %1833 = vmatpush.bf16.msra.mxu0 0
        %1834 = vmatpush.bf16.msra.mxu0 %v1777
        %1835 = vmatpush.bf16.msra.mxu0 %v1776
        %1836 = vmatmul.bf16.gmra.mxu0 %v1789
        %v1837 = vpop.f32.mrf.mxu0
        %v1838 = vadd.f32 %v1810, %v1837
        %v1839 = vpop.f32.mrf.mxu0
        %v1840 = vadd.f32 %v1812, %v1839
        %1841 = vmatmul.bf16.gmra.mxu0 %v1792
        %v1842 = vpop.f32.mrf.mxu0
        %v1843 = vadd.f32 %v1815, %v1842
        %v1844 = vpop.f32.mrf.mxu0
        %v1845 = vadd.f32 %v1817, %v1844
        %1846 = vmatmul.bf16.gmra.mxu0 %v1795
        %v1847 = vpop.f32.mrf.mxu0
        %v1848 = vadd.f32 %v1820, %v1847
        %v1849 = vpop.f32.mrf.mxu0
        %v1850 = vadd.f32 %v1822, %v1849
        %1851 = vmatmul.bf16.gmra.mxu0 %v1798
        %v1852 = vpop.f32.mrf.mxu0
        %v1853 = vadd.f32 %v1825, %v1852
        %v1854 = vpop.f32.mrf.mxu0
        %1855 = vdwg.mxu0
        %v1856 = vld [vmem:[#allocation3] sm:$0xff]
        %v1857 = vld [vmem:[#allocation3 + $0x8] sm:$0xff]
        %v1858 = vld [vmem:[#allocation3 + $0x10] sm:$0xff]
        %v1859 = vld [vmem:[#allocation3 + $0x18] sm:$0xff]
        %v1860 = vld [vmem:[#allocation3 + $0x20] sm:$0xff]
        %v1861 = vld [vmem:[#allocation3 + $0x28] sm:$0xff]
        %v1862 = vld [vmem:[#allocation3 + $0x30] sm:$0xff]
        %v1863 = vadd.f32 %v1856, %v1838
        %v1864 = vadd.f32 %v1857, %v1840
        %v1865 = vadd.f32 %v1858, %v1843
        %v1866 = vadd.f32 %v1859, %v1845
        %v1867 = vadd.f32 %v1860, %v1848
        %v1868 = vadd.f32 %v1861, %v1850
        %v1869 = vadd.f32 %v1862, %v1853
        %v1870 = vld [vmem:[%s8] sm:$0x1]
        %v1872 = vperm.slane %v1870, 0
        %v1874 = vadd.f32 %v1863, %v1872
        %v1875 = vadd.f32 %v1864, %v1872
        %v1876 = vadd.f32 %v1865, %v1872
        %v1877 = vadd.f32 %v1866, %v1872
        %v1878 = vadd.f32 %v1867, %v1872
        %v1879 = vadd.f32 %v1868, %v1872
        %v1880 = vadd.f32 %v1869, %v1872
        %1881 = vst.msk [vmem:[#allocation3] sm:$0xff] %vm338, %v1874
        %1882 = vst.msk [vmem:[#allocation3 + $0x8] sm:$0xff] %vm338, %v1875
        %1883 = vst.msk [vmem:[#allocation3 + $0x10] sm:$0xff] %vm338, %v1876
        %1884 = vst.msk [vmem:[#allocation3 + $0x18] sm:$0xff] %vm338, %v1877
        %1885 = vst.msk [vmem:[#allocation3 + $0x20] sm:$0xff] %vm338, %v1878
        %1886 = vst.msk [vmem:[#allocation3 + $0x28] sm:$0xff] %vm338, %v1879
        %1887 = vst.msk [vmem:[#allocation3 + $0x30] sm:$0xff] %vm338, %v1880
        %v1888 = vld [vmem:[#allocation2] sm:$0xff]
        %v1889 = vld [vmem:[#allocation2 + $0x8] sm:$0xff]
        %v1890 = vld [vmem:[#allocation2 + $0x10] sm:$0xff]
        %v1891 = vld [vmem:[#allocation2 + $0x18] sm:$0xff]
        %v1892 = vld [vmem:[#allocation2 + $0x20] sm:$0xff]
        %v1893 = vld [vmem:[#allocation2 + $0x28] sm:$0xff]
        %v1894 = vld [vmem:[#allocation2 + $0x30] sm:$0xff]
        %v1895 = vld [vmem:[#allocation3] sm:$0xff]
        %v1896 = vld [vmem:[#allocation3 + $0x8] sm:$0xff]
        %v1897 = vld [vmem:[#allocation3 + $0x10] sm:$0xff]
        %v1898 = vld [vmem:[#allocation3 + $0x18] sm:$0xff]
        %v1899 = vld [vmem:[#allocation3 + $0x20] sm:$0xff]
        %v1900 = vld [vmem:[#allocation3 + $0x28] sm:$0xff]
        %v1901 = vld [vmem:[#allocation3 + $0x30] sm:$0xff]
        %v1902 = vadd.f32 %v1888, %v1895
        %v1903 = vadd.f32 %v1889, %v1896
        %v1904 = vadd.f32 %v1890, %v1897
        %v1905 = vadd.f32 %v1891, %v1898
        %v1906 = vadd.f32 %v1892, %v1899
        %v1907 = vadd.f32 %v1893, %v1900
        %v1908 = vadd.f32 %v1894, %v1901
        %1909 = vst.msk [vmem:[#allocation2] sm:$0xff] %vm338, %v1902
        %1910 = vst.msk [vmem:[#allocation2 + $0x8] sm:$0xff] %vm338, %v1903
        %1911 = vst.msk [vmem:[#allocation2 + $0x10] sm:$0xff] %vm338, %v1904
        %1912 = vst.msk [vmem:[#allocation2 + $0x18] sm:$0xff] %vm338, %v1905
        %1913 = vst.msk [vmem:[#allocation2 + $0x20] sm:$0xff] %vm338, %v1906
        %1914 = vst.msk [vmem:[#allocation2 + $0x28] sm:$0xff] %vm338, %v1907
        %1915 = vst.msk [vmem:[#allocation2 + $0x30] sm:$0xff] %vm338, %v1908
        %v1916 = vld [vmem:[#allocation2 + $0x14] sm:$0xff]
        %v1917 = vld [vmem:[#allocation2 + $0x1c] sm:$0xff]
        %v1918 = vmul.f32 %v1916, 0.5
        %v1919 = vmul.f32 %v1917, 0.5
        %1920 = vst.msk [vmem:[%s298] sm:$0xff] %vm338, %v1918
        %1921 = vst.msk [vmem:[%s298 + $0x8] sm:$0xff] %vm338, %v1919
        %s1922 = sand.u32 %s213, 1
        %s1923 = scalar_lea.sflag [#allocation7], %s1922
        %s1924 = sand.u32 %s213, 1
        %s1925 = smul.addr %s1924, 16
        %s1926 = scalar_lea.vmem [#allocation6], %s1925
        // Predicated region
        $region72: #{tpu_custom_call.1} parent=51 // pred_check
          %p1927 = pneg %p223
        $region73: #{tpu_custom_call.1} parent=51 // pred_check_branch
          %1929 = sbr.rel (%p1927) target = $region75
        $region74: #{tpu_custom_call.1} parent=51 // pred_region
          %s1930 = smul.u32 2, %s28
          %1932 = vsyncadd %s1923, 0
          %s1933 = smul.addr %s27, 2
          %s1934 = sadd.s32 %s1930, %s1933
          %s1935 = smul.addr %s1934, 8
          %s1936 = scalar_lea.hbm %s9, %s1935
          %s1937 = sshll.u32 %s1926, 4
          %s1938 = int_to_ptr.vmem [resolvable:$true] %s1937
          %s1939 = sshll.u32 %s1936, 4
          %s1940 = int_to_ptr.hbm [resolvable:$true] %s1939
          %1945 = dma.vmem_to_hbm [thread:$0]  %s1938, 256, %s1940, %s1923, 128, 128, 8
        $region75: #{tpu_custom_call.1} parent=51 // pred_fallthru
          _
      $region52: #{tpu_custom_call.1} parent=5 // pred_fallthru
        _
      %p1946 = scmp.le.s32.totalorder 2, %s18
      // Predicated region
      $region76: #{tpu_custom_call.1} parent=5 // pred_check
        %p1947 = pneg %p1946
      $region77: #{tpu_custom_call.1} parent=5 // pred_check_branch
        %1949 = sbr.rel (%p1947) target = $region79
      $region78: #{tpu_custom_call.1} parent=5 // pred_region
        %s1950 = ssub.s32 %s18, 2
        // Predicated region
        $region80: #{tpu_custom_call.1} parent=78 // pred_check
          %p1951 = pneg %p229
        $region81: #{tpu_custom_call.1} parent=78 // pred_check_branch
          %1953 = sbr.rel (%p1951) target = $region83
        $region82: #{tpu_custom_call.1} parent=78 // pred_region
          %s1954 = sand.u32 %s214, 1
          %s1955 = scalar_lea.sflag [#allocation7], %s1954
          %s1956 = sand.u32 %s214, 1
          %s1957 = smul.addr %s1956, 16
          %s1958 = scalar_lea.vmem [#allocation6], %s1957
          %1960 = dma.done %s1955, 256
        $region83: #{tpu_custom_call.1} parent=78 // pred_fallthru
          _
      $region79: #{tpu_custom_call.1} parent=5 // pred_fallthru
        _
    $region6: #{tpu_custom_call.1} parent=1 // loop_footer
      %s22 = sadd.s32 1, %s18
    $region7: #{tpu_custom_call.1} parent=1 // loop_footer_branch
      %17 = sbr.rel target = $region3
    $region8: #{tpu_custom_call.1} parent=1 // loop_exit
      _
    %1961 = vsyncpa [#allocation7], 1
    %s1962 = scalar_lea.sflag [#allocation7], 1
    %1963 = vsyncpa %s1962, 1
  %1964 = vsyncmov [#allocation5]
  %s1965 = vpop.sfrf %1964
  %p1966 = scmp.eq.s32.totalorder %s1965, 0
  %p1967 = pneg %p1966
  %1969 = shalt.err (%p1967)

</llo_original>
